<compile_context>
chip_gen: v7x
topology: tpu7x:2x2x1
jax: 0.10.0
libtpu: 0.0.40
codegen_flags: <defaults>
</compile_context>

<pallas_src>
import jax
import jax.numpy as jnp
from jax import lax
from jax.experimental import pallas as pl
from jax.experimental.pallas import tpu as pltpu

# -- constants from the PyTorch module --------------------------------------
BETA = 0.95
ROWS, COLS = 3, 3
HIDDEN_RATIO = 10
NUM_INPUTS = ROWS * COLS                       # 9
NUM_HIDDEN = ROWS * COLS * HIDDEN_RATIO        # 90
NUM_OUTPUTS = 2
NUM_STEPS = 25
THRESHOLD = 1.0                                # snn.Leaky default threshold


def snn_kernel(x_ref, w1_ref, b1_ref, w2_ref, b2_ref, spk2_ref):
    """Whole network lives in VMEM (tiny shapes).

    Hot path = 25-step LIF recurrence on mem1 (pure VPU, single-vreg chain);
    both linears are single full-precision MXU matmuls outside the loop
    (fc1 hoisted, fc2 deferred over all steps at once)."""
    x = x_ref[...]
    w1 = w1_ref[...]
    b1 = b1_ref[...]
    w2 = w2_ref[...]
    b2 = b2_ref[...]

    batch = x.shape[0]

    # fc1: step-invariant -> one matmul + one bias broadcast total.
    cur1 = jnp.dot(x, w1,
                   preferred_element_type=jnp.float32,
                   precision=lax.Precision.HIGHEST) + b1

    # lif1.reset_mem()
    mem1 = jnp.zeros((batch, NUM_HIDDEN), dtype=jnp.float32)
    # snn.Leaky(reset_mechanism="subtract", threshold=1.0):
    #   reset_t = heaviside(mem_{t-1} - thr) == spk_{t-1}
    #   mem_t   = beta*mem_{t-1} + cur - reset_t * thr
    #   spk_t   = heaviside(mem_t - thr)
    # Carrying spk_prev as the reset deletes the redundant compare+cast+mul.
    spk_prev = jnp.zeros((batch, NUM_HIDDEN), dtype=jnp.float32)

    # Fully unrolled static loop (NUM_STEPS=25); only mem1/spk_prev are carried.
    # All 25 spike slices stay in registers (~25 vregs at batch=8, no spill).
    spk_slices = []
    for _ in range(NUM_STEPS):
        mem1 = BETA * mem1 + cur1 - spk_prev          # threshold == 1.0 folded in
        spk1 = (mem1 > THRESHOLD).astype(jnp.float32)
        spk_slices.append(spk1)
        spk_prev = spk1

    # Deferred fc2: one (NUM_STEPS*batch, NUM_HIDDEN) @ (NUM_HIDDEN, NUM_OUTPUTS)
    # matmul + one bias broadcast + one packed store. No scratch round-trip.
    spk1_all = jnp.concatenate(spk_slices, axis=0)
    spk2_ref[...] = jnp.dot(spk1_all, w2,
                            preferred_element_type=jnp.float32,
                            precision=lax.Precision.HIGHEST) + b2


def snn_forward(x, w1, b1, w2, b2):
    batch = x.shape[0]
    spk2_flat = pl.pallas_call(
        snn_kernel,
        out_shape=jax.ShapeDtypeStruct((NUM_STEPS * batch, NUM_OUTPUTS), jnp.float32),
        in_specs=[pl.BlockSpec(memory_space=pltpu.MemorySpace.VMEM)] * 5,
        out_specs=pl.BlockSpec(memory_space=pltpu.MemorySpace.VMEM),
    )(x, w1, b1, w2, b2)
    # Reshape packed slab -> (num_steps, batch, num_outputs) outside the kernel
    # (free layout plumbing, keeps the in-kernel store single & packed).
    spk2_rec = spk2_flat.reshape(NUM_STEPS, batch, NUM_OUTPUTS)
    # TODO(synk): the reference forward calls torch.stack on the *empty* mem2_rec
    # list (which raises in PyTorch); we return an empty (0, batch, 2) array instead.
    mem2_rec = jnp.zeros((0, batch, NUM_OUTPUTS), dtype=jnp.float32)
    return mem2_rec, spk2_rec


def init_params(key):
    """Deterministic nn.Linear-style init: U(-1/sqrt(fan_in), 1/sqrt(fan_in))."""
    k1, k2, k3, k4 = jax.random.split(key, 4)
    bound1 = 1.0 / (NUM_INPUTS ** 0.5)
    bound2 = 1.0 / (NUM_HIDDEN ** 0.5)
    w1 = jax.random.uniform(k1, (NUM_INPUTS, NUM_HIDDEN), jnp.float32, -bound1, bound1)
    b1 = jax.random.uniform(k2, (1, NUM_HIDDEN), jnp.float32, -bound1, bound1)
    w2 = jax.random.uniform(k3, (NUM_HIDDEN, NUM_OUTPUTS), jnp.float32, -bound2, bound2)
    b2 = jax.random.uniform(k4, (1, NUM_OUTPUTS), jnp.float32, -bound2, bound2)
    return w1, b1, w2, b2


def reference_forward(x, w1, b1, w2, b2):
    """Pure-JAX reference mirroring the PyTorch/snntorch forward (f32)."""
    cur1 = x @ w1 + b1
    mem1 = jnp.zeros((x.shape[0], NUM_HIDDEN), dtype=jnp.float32)
    outs = []
    for _ in range(NUM_STEPS):
        reset = (mem1 > THRESHOLD).astype(jnp.float32)
        mem1 = BETA * mem1 + cur1 - reset * THRESHOLD
        spk1 = (mem1 > THRESHOLD).astype(jnp.float32)
        outs.append(spk1 @ w2 + b2)
    return jnp.stack(outs, axis=0)


if __name__ == "__main__":
    key = jax.random.PRNGKey(0)
    kx, kp = jax.random.split(key)
    # batch=8 fills full sublane groups of each vreg and amortizes the
    # per-call launch + weight-DMA overhead (perf review item 3).
    batch = 8
    x = jax.random.uniform(kx, (batch, NUM_INPUTS), dtype=jnp.float32)
    w1, b1, w2, b2 = init_params(kp)

    mem2_rec, spk2_rec = snn_forward(x, w1, b1, w2, b2)
    jax.block_until_ready(spk2_rec)

    assert spk2_rec.shape == (NUM_STEPS, batch, NUM_OUTPUTS)
    assert mem2_rec.shape == (0, batch, NUM_OUTPUTS)
    assert bool(jnp.all(jnp.isfinite(spk2_rec)))

    # Correctness vs. pure-JAX reference of the original step-wise forward.
    ref = reference_forward(x, w1, b1, w2, b2)
    assert bool(jnp.allclose(spk2_rec, ref, atol=1e-5, rtol=1e-5))

    print("KERNEL_OK")
</pallas_src>

<mosaic_0001>
module attributes {stable_mosaic.version = 11 : i64} {
  func.func @snn_kernel(%arg0: memref<8x9xf32, #tpu.memory_space<vmem>>, %arg1: memref<9x90xf32, #tpu.memory_space<vmem>>, %arg2: memref<1x90xf32, #tpu.memory_space<vmem>>, %arg3: memref<90x2xf32, #tpu.memory_space<vmem>>, %arg4: memref<1x2xf32, #tpu.memory_space<vmem>>, %arg5: memref<200x2xf32, #tpu.memory_space<vmem>>) attributes {dimension_semantics = [], scalar_prefetch = 0 : i64, scratch_operands = 0 : i64, tpu.core_type = #tpu.core_type<tc>} {
    %c0 = arith.constant 0 : index
    %c0_0 = arith.constant 0 : index
    %0 = vector.load %arg0[%c0, %c0_0] : memref<8x9xf32, #tpu.memory_space<vmem>>, vector<8x9xf32>
    %c0_1 = arith.constant 0 : index
    %c0_2 = arith.constant 0 : index
    %1 = vector.load %arg1[%c0_1, %c0_2] : memref<9x90xf32, #tpu.memory_space<vmem>>, vector<9x90xf32>
    %c0_3 = arith.constant 0 : index
    %c0_4 = arith.constant 0 : index
    %2 = vector.load %arg2[%c0_3, %c0_4] : memref<1x90xf32, #tpu.memory_space<vmem>>, vector<1x90xf32>
    %c0_5 = arith.constant 0 : index
    %c0_6 = arith.constant 0 : index
    %3 = vector.load %arg3[%c0_5, %c0_6] : memref<90x2xf32, #tpu.memory_space<vmem>>, vector<90x2xf32>
    %c0_7 = arith.constant 0 : index
    %c0_8 = arith.constant 0 : index
    %4 = vector.load %arg4[%c0_7, %c0_8] : memref<1x2xf32, #tpu.memory_space<vmem>>, vector<1x2xf32>
    %cst = arith.constant dense<0.000000e+00> : vector<8x90xf32>
    %5 = tpu.matmul %0, %1, %cst {dimension_numbers = #tpu.dot_dimension_numbers<[1], [0], [0], [1], [0, 0, 1, 1], [], []>, precision = #tpu.contract_precision<fp32>} : vector<8x9xf32>, vector<9x90xf32>, vector<8x90xf32> -> vector<8x90xf32>
    %6 = vector.broadcast %2 : vector<1x90xf32> to vector<8x90xf32>
    %7 = arith.addf %5, %6 : vector<8x90xf32>
    %cst_9 = arith.constant 0.000000e+00 : f32
    %8 = vector.broadcast %cst_9 : f32 to vector<8x90xf32>
    %cst_10 = arith.constant 0.000000e+00 : f32
    %9 = vector.broadcast %cst_10 : f32 to vector<8x90xf32>
    %cst_11 = arith.constant 0.949999988 : f32
    %10 = vector.broadcast %cst_11 : f32 to vector<8x90xf32>
    %11 = arith.mulf %10, %8 : vector<8x90xf32>
    %12 = arith.addf %11, %7 : vector<8x90xf32>
    %13 = arith.subf %12, %9 : vector<8x90xf32>
    %cst_12 = arith.constant 1.000000e+00 : f32
    %14 = vector.broadcast %cst_12 : f32 to vector<8x90xf32>
    %15 = arith.cmpf ogt, %13, %14 : vector<8x90xf32>
    %16 = arith.extui %15 : vector<8x90xi1> to vector<8x90xi32>
    %17 = arith.sitofp %16 : vector<8x90xi32> to vector<8x90xf32>
    %cst_13 = arith.constant 0.949999988 : f32
    %18 = vector.broadcast %cst_13 : f32 to vector<8x90xf32>
    %19 = arith.mulf %18, %13 : vector<8x90xf32>
    %20 = arith.addf %19, %7 : vector<8x90xf32>
    %21 = arith.subf %20, %17 : vector<8x90xf32>
    %cst_14 = arith.constant 1.000000e+00 : f32
    %22 = vector.broadcast %cst_14 : f32 to vector<8x90xf32>
    %23 = arith.cmpf ogt, %21, %22 : vector<8x90xf32>
    %24 = arith.extui %23 : vector<8x90xi1> to vector<8x90xi32>
    %25 = arith.sitofp %24 : vector<8x90xi32> to vector<8x90xf32>
    %cst_15 = arith.constant 0.949999988 : f32
    %26 = vector.broadcast %cst_15 : f32 to vector<8x90xf32>
    %27 = arith.mulf %26, %21 : vector<8x90xf32>
    %28 = arith.addf %27, %7 : vector<8x90xf32>
    %29 = arith.subf %28, %25 : vector<8x90xf32>
    %cst_16 = arith.constant 1.000000e+00 : f32
    %30 = vector.broadcast %cst_16 : f32 to vector<8x90xf32>
    %31 = arith.cmpf ogt, %29, %30 : vector<8x90xf32>
    %32 = arith.extui %31 : vector<8x90xi1> to vector<8x90xi32>
    %33 = arith.sitofp %32 : vector<8x90xi32> to vector<8x90xf32>
    %cst_17 = arith.constant 0.949999988 : f32
    %34 = vector.broadcast %cst_17 : f32 to vector<8x90xf32>
    %35 = arith.mulf %34, %29 : vector<8x90xf32>
    %36 = arith.addf %35, %7 : vector<8x90xf32>
    %37 = arith.subf %36, %33 : vector<8x90xf32>
    %cst_18 = arith.constant 1.000000e+00 : f32
    %38 = vector.broadcast %cst_18 : f32 to vector<8x90xf32>
    %39 = arith.cmpf ogt, %37, %38 : vector<8x90xf32>
    %40 = arith.extui %39 : vector<8x90xi1> to vector<8x90xi32>
    %41 = arith.sitofp %40 : vector<8x90xi32> to vector<8x90xf32>
    %cst_19 = arith.constant 0.949999988 : f32
    %42 = vector.broadcast %cst_19 : f32 to vector<8x90xf32>
    %43 = arith.mulf %42, %37 : vector<8x90xf32>
    %44 = arith.addf %43, %7 : vector<8x90xf32>
    %45 = arith.subf %44, %41 : vector<8x90xf32>
    %cst_20 = arith.constant 1.000000e+00 : f32
    %46 = vector.broadcast %cst_20 : f32 to vector<8x90xf32>
    %47 = arith.cmpf ogt, %45, %46 : vector<8x90xf32>
    %48 = arith.extui %47 : vector<8x90xi1> to vector<8x90xi32>
    %49 = arith.sitofp %48 : vector<8x90xi32> to vector<8x90xf32>
    %cst_21 = arith.constant 0.949999988 : f32
    %50 = vector.broadcast %cst_21 : f32 to vector<8x90xf32>
    %51 = arith.mulf %50, %45 : vector<8x90xf32>
    %52 = arith.addf %51, %7 : vector<8x90xf32>
    %53 = arith.subf %52, %49 : vector<8x90xf32>
    %cst_22 = arith.constant 1.000000e+00 : f32
    %54 = vector.broadcast %cst_22 : f32 to vector<8x90xf32>
    %55 = arith.cmpf ogt, %53, %54 : vector<8x90xf32>
    %56 = arith.extui %55 : vector<8x90xi1> to vector<8x90xi32>
    %57 = arith.sitofp %56 : vector<8x90xi32> to vector<8x90xf32>
    %cst_23 = arith.constant 0.949999988 : f32
    %58 = vector.broadcast %cst_23 : f32 to vector<8x90xf32>
    %59 = arith.mulf %58, %53 : vector<8x90xf32>
    %60 = arith.addf %59, %7 : vector<8x90xf32>
    %61 = arith.subf %60, %57 : vector<8x90xf32>
    %cst_24 = arith.constant 1.000000e+00 : f32
    %62 = vector.broadcast %cst_24 : f32 to vector<8x90xf32>
    %63 = arith.cmpf ogt, %61, %62 : vector<8x90xf32>
    %64 = arith.extui %63 : vector<8x90xi1> to vector<8x90xi32>
    %65 = arith.sitofp %64 : vector<8x90xi32> to vector<8x90xf32>
    %cst_25 = arith.constant 0.949999988 : f32
    %66 = vector.broadcast %cst_25 : f32 to vector<8x90xf32>
    %67 = arith.mulf %66, %61 : vector<8x90xf32>
    %68 = arith.addf %67, %7 : vector<8x90xf32>
    %69 = arith.subf %68, %65 : vector<8x90xf32>
    %cst_26 = arith.constant 1.000000e+00 : f32
    %70 = vector.broadcast %cst_26 : f32 to vector<8x90xf32>
    %71 = arith.cmpf ogt, %69, %70 : vector<8x90xf32>
    %72 = arith.extui %71 : vector<8x90xi1> to vector<8x90xi32>
    %73 = arith.sitofp %72 : vector<8x90xi32> to vector<8x90xf32>
    %cst_27 = arith.constant 0.949999988 : f32
    %74 = vector.broadcast %cst_27 : f32 to vector<8x90xf32>
    %75 = arith.mulf %74, %69 : vector<8x90xf32>
    %76 = arith.addf %75, %7 : vector<8x90xf32>
    %77 = arith.subf %76, %73 : vector<8x90xf32>
    %cst_28 = arith.constant 1.000000e+00 : f32
    %78 = vector.broadcast %cst_28 : f32 to vector<8x90xf32>
    %79 = arith.cmpf ogt, %77, %78 : vector<8x90xf32>
    %80 = arith.extui %79 : vector<8x90xi1> to vector<8x90xi32>
    %81 = arith.sitofp %80 : vector<8x90xi32> to vector<8x90xf32>
    %cst_29 = arith.constant 0.949999988 : f32
    %82 = vector.broadcast %cst_29 : f32 to vector<8x90xf32>
    %83 = arith.mulf %82, %77 : vector<8x90xf32>
    %84 = arith.addf %83, %7 : vector<8x90xf32>
    %85 = arith.subf %84, %81 : vector<8x90xf32>
    %cst_30 = arith.constant 1.000000e+00 : f32
    %86 = vector.broadcast %cst_30 : f32 to vector<8x90xf32>
    %87 = arith.cmpf ogt, %85, %86 : vector<8x90xf32>
    %88 = arith.extui %87 : vector<8x90xi1> to vector<8x90xi32>
    %89 = arith.sitofp %88 : vector<8x90xi32> to vector<8x90xf32>
    %cst_31 = arith.constant 0.949999988 : f32
    %90 = vector.broadcast %cst_31 : f32 to vector<8x90xf32>
    %91 = arith.mulf %90, %85 : vector<8x90xf32>
    %92 = arith.addf %91, %7 : vector<8x90xf32>
    %93 = arith.subf %92, %89 : vector<8x90xf32>
    %cst_32 = arith.constant 1.000000e+00 : f32
    %94 = vector.broadcast %cst_32 : f32 to vector<8x90xf32>
    %95 = arith.cmpf ogt, %93, %94 : vector<8x90xf32>
    %96 = arith.extui %95 : vector<8x90xi1> to vector<8x90xi32>
    %97 = arith.sitofp %96 : vector<8x90xi32> to vector<8x90xf32>
    %cst_33 = arith.constant 0.949999988 : f32
    %98 = vector.broadcast %cst_33 : f32 to vector<8x90xf32>
    %99 = arith.mulf %98, %93 : vector<8x90xf32>
    %100 = arith.addf %99, %7 : vector<8x90xf32>
    %101 = arith.subf %100, %97 : vector<8x90xf32>
    %cst_34 = arith.constant 1.000000e+00 : f32
    %102 = vector.broadcast %cst_34 : f32 to vector<8x90xf32>
    %103 = arith.cmpf ogt, %101, %102 : vector<8x90xf32>
    %104 = arith.extui %103 : vector<8x90xi1> to vector<8x90xi32>
    %105 = arith.sitofp %104 : vector<8x90xi32> to vector<8x90xf32>
    %cst_35 = arith.constant 0.949999988 : f32
    %106 = vector.broadcast %cst_35 : f32 to vector<8x90xf32>
    %107 = arith.mulf %106, %101 : vector<8x90xf32>
    %108 = arith.addf %107, %7 : vector<8x90xf32>
    %109 = arith.subf %108, %105 : vector<8x90xf32>
    %cst_36 = arith.constant 1.000000e+00 : f32
    %110 = vector.broadcast %cst_36 : f32 to vector<8x90xf32>
    %111 = arith.cmpf ogt, %109, %110 : vector<8x90xf32>
    %112 = arith.extui %111 : vector<8x90xi1> to vector<8x90xi32>
    %113 = arith.sitofp %112 : vector<8x90xi32> to vector<8x90xf32>
    %cst_37 = arith.constant 0.949999988 : f32
    %114 = vector.broadcast %cst_37 : f32 to vector<8x90xf32>
    %115 = arith.mulf %114, %109 : vector<8x90xf32>
    %116 = arith.addf %115, %7 : vector<8x90xf32>
    %117 = arith.subf %116, %113 : vector<8x90xf32>
    %cst_38 = arith.constant 1.000000e+00 : f32
    %118 = vector.broadcast %cst_38 : f32 to vector<8x90xf32>
    %119 = arith.cmpf ogt, %117, %118 : vector<8x90xf32>
    %120 = arith.extui %119 : vector<8x90xi1> to vector<8x90xi32>
    %121 = arith.sitofp %120 : vector<8x90xi32> to vector<8x90xf32>
    %cst_39 = arith.constant 0.949999988 : f32
    %122 = vector.broadcast %cst_39 : f32 to vector<8x90xf32>
    %123 = arith.mulf %122, %117 : vector<8x90xf32>
    %124 = arith.addf %123, %7 : vector<8x90xf32>
    %125 = arith.subf %124, %121 : vector<8x90xf32>
    %cst_40 = arith.constant 1.000000e+00 : f32
    %126 = vector.broadcast %cst_40 : f32 to vector<8x90xf32>
    %127 = arith.cmpf ogt, %125, %126 : vector<8x90xf32>
    %128 = arith.extui %127 : vector<8x90xi1> to vector<8x90xi32>
    %129 = arith.sitofp %128 : vector<8x90xi32> to vector<8x90xf32>
    %cst_41 = arith.constant 0.949999988 : f32
    %130 = vector.broadcast %cst_41 : f32 to vector<8x90xf32>
    %131 = arith.mulf %130, %125 : vector<8x90xf32>
    %132 = arith.addf %131, %7 : vector<8x90xf32>
    %133 = arith.subf %132, %129 : vector<8x90xf32>
    %cst_42 = arith.constant 1.000000e+00 : f32
    %134 = vector.broadcast %cst_42 : f32 to vector<8x90xf32>
    %135 = arith.cmpf ogt, %133, %134 : vector<8x90xf32>
    %136 = arith.extui %135 : vector<8x90xi1> to vector<8x90xi32>
    %137 = arith.sitofp %136 : vector<8x90xi32> to vector<8x90xf32>
    %cst_43 = arith.constant 0.949999988 : f32
    %138 = vector.broadcast %cst_43 : f32 to vector<8x90xf32>
    %139 = arith.mulf %138, %133 : vector<8x90xf32>
    %140 = arith.addf %139, %7 : vector<8x90xf32>
    %141 = arith.subf %140, %137 : vector<8x90xf32>
    %cst_44 = arith.constant 1.000000e+00 : f32
    %142 = vector.broadcast %cst_44 : f32 to vector<8x90xf32>
    %143 = arith.cmpf ogt, %141, %142 : vector<8x90xf32>
    %144 = arith.extui %143 : vector<8x90xi1> to vector<8x90xi32>
    %145 = arith.sitofp %144 : vector<8x90xi32> to vector<8x90xf32>
    %cst_45 = arith.constant 0.949999988 : f32
    %146 = vector.broadcast %cst_45 : f32 to vector<8x90xf32>
    %147 = arith.mulf %146, %141 : vector<8x90xf32>
    %148 = arith.addf %147, %7 : vector<8x90xf32>
    %149 = arith.subf %148, %145 : vector<8x90xf32>
    %cst_46 = arith.constant 1.000000e+00 : f32
    %150 = vector.broadcast %cst_46 : f32 to vector<8x90xf32>
    %151 = arith.cmpf ogt, %149, %150 : vector<8x90xf32>
    %152 = arith.extui %151 : vector<8x90xi1> to vector<8x90xi32>
    %153 = arith.sitofp %152 : vector<8x90xi32> to vector<8x90xf32>
    %cst_47 = arith.constant 0.949999988 : f32
    %154 = vector.broadcast %cst_47 : f32 to vector<8x90xf32>
    %155 = arith.mulf %154, %149 : vector<8x90xf32>
    %156 = arith.addf %155, %7 : vector<8x90xf32>
    %157 = arith.subf %156, %153 : vector<8x90xf32>
    %cst_48 = arith.constant 1.000000e+00 : f32
    %158 = vector.broadcast %cst_48 : f32 to vector<8x90xf32>
    %159 = arith.cmpf ogt, %157, %158 : vector<8x90xf32>
    %160 = arith.extui %159 : vector<8x90xi1> to vector<8x90xi32>
    %161 = arith.sitofp %160 : vector<8x90xi32> to vector<8x90xf32>
    %cst_49 = arith.constant 0.949999988 : f32
    %162 = vector.broadcast %cst_49 : f32 to vector<8x90xf32>
    %163 = arith.mulf %162, %157 : vector<8x90xf32>
    %164 = arith.addf %163, %7 : vector<8x90xf32>
    %165 = arith.subf %164, %161 : vector<8x90xf32>
    %cst_50 = arith.constant 1.000000e+00 : f32
    %166 = vector.broadcast %cst_50 : f32 to vector<8x90xf32>
    %167 = arith.cmpf ogt, %165, %166 : vector<8x90xf32>
    %168 = arith.extui %167 : vector<8x90xi1> to vector<8x90xi32>
    %169 = arith.sitofp %168 : vector<8x90xi32> to vector<8x90xf32>
    %cst_51 = arith.constant 0.949999988 : f32
    %170 = vector.broadcast %cst_51 : f32 to vector<8x90xf32>
    %171 = arith.mulf %170, %165 : vector<8x90xf32>
    %172 = arith.addf %171, %7 : vector<8x90xf32>
    %173 = arith.subf %172, %169 : vector<8x90xf32>
    %cst_52 = arith.constant 1.000000e+00 : f32
    %174 = vector.broadcast %cst_52 : f32 to vector<8x90xf32>
    %175 = arith.cmpf ogt, %173, %174 : vector<8x90xf32>
    %176 = arith.extui %175 : vector<8x90xi1> to vector<8x90xi32>
    %177 = arith.sitofp %176 : vector<8x90xi32> to vector<8x90xf32>
    %cst_53 = arith.constant 0.949999988 : f32
    %178 = vector.broadcast %cst_53 : f32 to vector<8x90xf32>
    %179 = arith.mulf %178, %173 : vector<8x90xf32>
    %180 = arith.addf %179, %7 : vector<8x90xf32>
    %181 = arith.subf %180, %177 : vector<8x90xf32>
    %cst_54 = arith.constant 1.000000e+00 : f32
    %182 = vector.broadcast %cst_54 : f32 to vector<8x90xf32>
    %183 = arith.cmpf ogt, %181, %182 : vector<8x90xf32>
    %184 = arith.extui %183 : vector<8x90xi1> to vector<8x90xi32>
    %185 = arith.sitofp %184 : vector<8x90xi32> to vector<8x90xf32>
    %cst_55 = arith.constant 0.949999988 : f32
    %186 = vector.broadcast %cst_55 : f32 to vector<8x90xf32>
    %187 = arith.mulf %186, %181 : vector<8x90xf32>
    %188 = arith.addf %187, %7 : vector<8x90xf32>
    %189 = arith.subf %188, %185 : vector<8x90xf32>
    %cst_56 = arith.constant 1.000000e+00 : f32
    %190 = vector.broadcast %cst_56 : f32 to vector<8x90xf32>
    %191 = arith.cmpf ogt, %189, %190 : vector<8x90xf32>
    %192 = arith.extui %191 : vector<8x90xi1> to vector<8x90xi32>
    %193 = arith.sitofp %192 : vector<8x90xi32> to vector<8x90xf32>
    %cst_57 = arith.constant 0.949999988 : f32
    %194 = vector.broadcast %cst_57 : f32 to vector<8x90xf32>
    %195 = arith.mulf %194, %189 : vector<8x90xf32>
    %196 = arith.addf %195, %7 : vector<8x90xf32>
    %197 = arith.subf %196, %193 : vector<8x90xf32>
    %cst_58 = arith.constant 1.000000e+00 : f32
    %198 = vector.broadcast %cst_58 : f32 to vector<8x90xf32>
    %199 = arith.cmpf ogt, %197, %198 : vector<8x90xf32>
    %200 = arith.extui %199 : vector<8x90xi1> to vector<8x90xi32>
    %201 = arith.sitofp %200 : vector<8x90xi32> to vector<8x90xf32>
    %cst_59 = arith.constant 0.949999988 : f32
    %202 = vector.broadcast %cst_59 : f32 to vector<8x90xf32>
    %203 = arith.mulf %202, %197 : vector<8x90xf32>
    %204 = arith.addf %203, %7 : vector<8x90xf32>
    %205 = arith.subf %204, %201 : vector<8x90xf32>
    %cst_60 = arith.constant 1.000000e+00 : f32
    %206 = vector.broadcast %cst_60 : f32 to vector<8x90xf32>
    %207 = arith.cmpf ogt, %205, %206 : vector<8x90xf32>
    %208 = arith.extui %207 : vector<8x90xi1> to vector<8x90xi32>
    %209 = arith.sitofp %208 : vector<8x90xi32> to vector<8x90xf32>
    %210 = tpu.concatenate %17, %25, %33, %41, %49, %57, %65, %73, %81, %89, %97, %105, %113, %121, %129, %137 in 0 : vector<8x90xf32>, vector<8x90xf32>, vector<8x90xf32>, vector<8x90xf32>, vector<8x90xf32>, vector<8x90xf32>, vector<8x90xf32>, vector<8x90xf32>, vector<8x90xf32>, vector<8x90xf32>, vector<8x90xf32>, vector<8x90xf32>, vector<8x90xf32>, vector<8x90xf32>, vector<8x90xf32>, vector<8x90xf32> -> vector<128x90xf32>
    %211 = tpu.concatenate %145, %153, %161, %169, %177, %185, %193, %201, %209 in 0 : vector<8x90xf32>, vector<8x90xf32>, vector<8x90xf32>, vector<8x90xf32>, vector<8x90xf32>, vector<8x90xf32>, vector<8x90xf32>, vector<8x90xf32>, vector<8x90xf32> -> vector<72x90xf32>
    %212 = tpu.concatenate %210, %211 in 0 : vector<128x90xf32>, vector<72x90xf32> -> vector<200x90xf32>
    %cst_61 = arith.constant dense<0.000000e+00> : vector<200x2xf32>
    %213 = tpu.matmul %212, %3, %cst_61 {dimension_numbers = #tpu.dot_dimension_numbers<[1], [0], [0], [1], [0, 0, 1, 1], [], []>, precision = #tpu.contract_precision<fp32>} : vector<200x90xf32>, vector<90x2xf32>, vector<200x2xf32> -> vector<200x2xf32>
    %214 = vector.broadcast %4 : vector<1x2xf32> to vector<200x2xf32>
    %215 = arith.addf %213, %214 : vector<200x2xf32>
    %c0_62 = arith.constant 0 : index
    %c0_63 = arith.constant 0 : index
    %216 = vector.load %arg5[%c0_62, %c0_63] : memref<200x2xf32, #tpu.memory_space<vmem>>, vector<200x2xf32>
    tpu.vector_store %arg5[%c0_62, %c0_63], %215 {strides = array<i32>} : memref<200x2xf32, #tpu.memory_space<vmem>>, vector<200x2xf32>,
    return
  }
}

</mosaic_0001>

<llo_original>
// kernel: tpu_custom_call.1
$region0: #{tpu_custom_call.1}
  #allocation0 [shape = 'u32[]', space=smem, size = 0x4, offset = 0x4, fixed_abs, tag = 'smem constant byte address 0x4 - core index']
  #allocation1 [shape = 'u32[144,128]{1,0:T(1,128)}', space=vmem, size = 0x12000, scoped, tag = 'internal scratch']
  %s0 = inlined_call_operand.vmem [shape: f32[8,9], index: 0, kind: input, shape index: {}]
  %s1 = inlined_call_operand.vmem [shape: f32[9,90], index: 1, kind: input, shape index: {}]
  %s2 = inlined_call_operand.vmem [shape: f32[1,90], index: 2, kind: input, shape index: {}]
  %s3 = inlined_call_operand.vmem [shape: f32[90,2], index: 3, kind: input, shape index: {}]
  %s4 = inlined_call_operand.vmem [shape: f32[1,2], index: 4, kind: input, shape index: {}]
  %s5 = inlined_call_operand.vmem [shape: f32[200,2], index: 5, kind: output, shape index: {}]
  %s6 = sld [smem:[#allocation0]]
  $region30: #{tpu_custom_call.1} parent=0
    _
  %s8 = ssub.s32 1, %s6
  %s9 = scalar_select 0, %s8, %s6
  // Predicated region
  $region2: #{tpu_custom_call.1} parent=0 // pred_check
    _
  $region3: #{tpu_custom_call.1} parent=0 // pred_check_branch
    %11 = sbr.rel (0) target = $region5
  $region4: #{tpu_custom_call.1} parent=0 // pred_region
    _
  $region5: #{tpu_custom_call.1} parent=0 // pred_fallthru
    _
  // Predicated region
  $region6: #{tpu_custom_call.1} parent=0 // pred_check
    _
  $region7: #{tpu_custom_call.1} parent=0 // pred_check_branch
    %13 = sbr.rel (0) target = $region9
  $region8: #{tpu_custom_call.1} parent=0 // pred_region
    _
  $region9: #{tpu_custom_call.1} parent=0 // pred_fallthru
    _
  // Predicated region
  $region10: #{tpu_custom_call.1} parent=0 // pred_check
    _
  $region11: #{tpu_custom_call.1} parent=0 // pred_check_branch
    %15 = sbr.rel (0) target = $region13
  $region12: #{tpu_custom_call.1} parent=0 // pred_region
    _
  $region13: #{tpu_custom_call.1} parent=0 // pred_fallthru
    _
  // Predicated region
  $region14: #{tpu_custom_call.1} parent=0 // pred_check
    _
  $region15: #{tpu_custom_call.1} parent=0 // pred_check_branch
    %17 = sbr.rel (0) target = $region17
  $region16: #{tpu_custom_call.1} parent=0 // pred_region
    _
  $region17: #{tpu_custom_call.1} parent=0 // pred_fallthru
    _
  // Predicated region
  $region18: #{tpu_custom_call.1} parent=0 // pred_check
    _
  $region19: #{tpu_custom_call.1} parent=0 // pred_check_branch
    %19 = sbr.rel (0) target = $region21
  $region20: #{tpu_custom_call.1} parent=0 // pred_region
    _
  $region21: #{tpu_custom_call.1} parent=0 // pred_fallthru
    _
  %v20 = vld [vmem:[%s0] sm:$0xff]
  %v21 = vld [vmem:[%s1] sm:$0xff]
  %v22 = vld [vmem:[%s1 + $0x8] sm:$0x1]
  %v23 = vld [vmem:[%s2] sm:$0x1]
  %v24 = vld [vmem:[%s3] sm:$0xff]
  %v25 = vld [vmem:[%s3 + $0x8] sm:$0xff]
  %v26 = vld [vmem:[%s3 + $0x10] sm:$0xff]
  %v27 = vld [vmem:[%s3 + $0x18] sm:$0xff]
  %v28 = vld [vmem:[%s3 + $0x20] sm:$0xff]
  %v29 = vld [vmem:[%s3 + $0x28] sm:$0xff]
  %v30 = vld [vmem:[%s3 + $0x30] sm:$0xff]
  %v31 = vld [vmem:[%s3 + $0x38] sm:$0xff]
  %v32 = vld [vmem:[%s3 + $0x40] sm:$0xff]
  %v33 = vld [vmem:[%s3 + $0x48] sm:$0xff]
  %v34 = vld [vmem:[%s3 + $0x50] sm:$0xff]
  %v35 = vld [vmem:[%s3 + $0x58] sm:$0x3]
  %v36 = vld [vmem:[%s4] sm:$0x1]
  %v38 = vlaneseq
  %v39 = vshrl.u32 %v38, 7
  %v40 = vsub.s32 0, %v39
  %v41 = vrot.slane %v23, %v40
  %vm43 = vcmask 72704
  %v45 = vsel %vm43, %v20, 0
  %vm47 = vcmask 1040384
  %v49 = vsel %vm47, %v22, 0
  %51 = vmatprep.subr.mxu0 0.0
  %v52 = vand.u32 %v21, 4294901760
  %53 = vmatpush1.msra.mxu0 %v52
  %54 = vmatprep.subr.mxu0 0.0
  %v55 = vand.u32 %v49, 4294901760
  %56 = vmatpush1.msra.mxu0 %v55
  %57 = vmatprep.subr.mxu0 0.0
  %58 = vmatpush1.msra.mxu0 0.0
  %59 = vmatprep.subr.mxu0 0.0
  %60 = vmatpush1.msra.mxu0 0.0
  %61 = vmatprep.subr.mxu0 0.0
  %62 = vmatpush1.msra.mxu0 0.0
  %63 = vmatprep.subr.mxu0 0.0
  %64 = vmatpush1.msra.mxu0 0.0
  %65 = vmatprep.subr.mxu0 0.0
  %66 = vmatpush1.msra.mxu0 0.0
  %67 = vmatprep.subr.mxu0 0.0
  %68 = vmatpush1.msra.mxu0 0.0
  %69 = vmatprep.subr.mxu0 0.0
  %70 = vmatpush1.msra.mxu0 0.0
  %71 = vmatprep.subr.mxu0 0.0
  %72 = vmatpush1.msra.mxu0 0.0
  %73 = vmatprep.subr.mxu0 0.0
  %74 = vmatpush1.msra.mxu0 0.0
  %75 = vmatprep.subr.mxu0 0.0
  %76 = vmatpush1.msra.mxu0 0.0
  %77 = vmatprep.subr.mxu0 0.0
  %78 = vmatpush1.msra.mxu0 0.0
  %79 = vmatprep.subr.mxu0 0.0
  %80 = vmatpush1.msra.mxu0 0.0
  %81 = vmatprep.subr.mxu0 0.0
  %82 = vmatpush1.msra.mxu0 0.0
  %83 = vmatprep.subr.mxu0 0.0
  %84 = vmatpush1.msra.mxu0 0.0
  %85 = vmatprep.subr.mxu0 0.0
  %86 = vmatpush1.msra.mxu0 0.0
  %87 = vmatprep.subr.mxu0 0.0
  %88 = vmatpush1.msra.mxu0 0.0
  %89 = vmatprep.subr.mxu0 0.0
  %90 = vmatpush1.msra.mxu0 0.0
  %91 = vmatprep.subr.mxu0 0.0
  %92 = vmatpush1.msra.mxu0 0.0
  %93 = vmatprep.subr.mxu0 0.0
  %94 = vmatpush1.msra.mxu0 0.0
  %95 = vmatprep.subr.mxu0 0.0
  %96 = vmatpush1.msra.mxu0 0.0
  %97 = vmatprep.subr.mxu0 0.0
  %98 = vmatpush1.msra.mxu0 0.0
  %99 = vmatprep.subr.mxu0 0.0
  %100 = vmatpush1.msra.mxu0 0.0
  %101 = vmatprep.subr.mxu0 0.0
  %102 = vmatpush1.msra.mxu0 0.0
  %103 = vmatprep.subr.mxu0 0.0
  %104 = vmatpush1.msra.mxu0 0.0
  %105 = vmatprep.subr.mxu0 0.0
  %106 = vmatpush1.msra.mxu0 0.0
  %107 = vmatprep.subr.mxu0 0.0
  %108 = vmatpush1.msra.mxu0 0.0
  %109 = vmatprep.subr.mxu0 0.0
  %110 = vmatpush1.msra.mxu0 0.0
  %111 = vmatprep.subr.mxu0 0.0
  %112 = vmatpush1.msra.mxu0 0.0
  %113 = vmatprep.subr.mxu0 0.0
  %114 = vmatpush1.msra.mxu0 0.0
  %115 = vmatprep.subr.mxu0 0.0
  %116 = vmatpush1.msra.mxu0 0.0
  %117 = vmatprep.mubr.f32.mxu0 0.0
  %v118 = vand.u32 %v45, 4294901760
  %v119 = vsub.f32 %v45, %v118
  %v120 = vand.u32 %v119, 4294901760
  %v121 = vsub.f32 %v119, %v120
  %v122 = vand.u32 %v121, 4294901760
  %123 = vmatmul.mubr.f32.gmra.mrb[0].mxu0 %v122
  %v124 = vpop.f32.mrb[0].mxu0
  %v125 = vadd.f32 %v41, %v124
  %v126 = vpop.f32.mrb[0].mxu0
  %127 = vdwg.mxu0
  %128 = vmatprep.subr.mxu0 0.0
  %v129 = vand.u32 %v21, 4294901760
  %v130 = vsub.f32 %v21, %v129
  %v131 = vand.u32 %v130, 4294901760
  %v132 = vsub.f32 %v130, %v131
  %v133 = vand.u32 %v132, 4294901760
  %134 = vmatpush1.msra.mxu0 %v133
  %135 = vmatprep.subr.mxu0 0.0
  %v136 = vand.u32 %v49, 4294901760
  %v137 = vsub.f32 %v49, %v136
  %v138 = vand.u32 %v137, 4294901760
  %v139 = vsub.f32 %v137, %v138
  %v140 = vand.u32 %v139, 4294901760
  %141 = vmatpush1.msra.mxu0 %v140
  %142 = vmatprep.subr.mxu0 0.0
  %143 = vmatpush1.msra.mxu0 0.0
  %144 = vmatprep.subr.mxu0 0.0
  %145 = vmatpush1.msra.mxu0 0.0
  %146 = vmatprep.subr.mxu0 0.0
  %147 = vmatpush1.msra.mxu0 0.0
  %148 = vmatprep.subr.mxu0 0.0
  %149 = vmatpush1.msra.mxu0 0.0
  %150 = vmatprep.subr.mxu0 0.0
  %151 = vmatpush1.msra.mxu0 0.0
  %152 = vmatprep.subr.mxu0 0.0
  %153 = vmatpush1.msra.mxu0 0.0
  %154 = vmatprep.subr.mxu0 0.0
  %155 = vmatpush1.msra.mxu0 0.0
  %156 = vmatprep.subr.mxu0 0.0
  %157 = vmatpush1.msra.mxu0 0.0
  %158 = vmatprep.subr.mxu0 0.0
  %159 = vmatpush1.msra.mxu0 0.0
  %160 = vmatprep.subr.mxu0 0.0
  %161 = vmatpush1.msra.mxu0 0.0
  %162 = vmatprep.subr.mxu0 0.0
  %163 = vmatpush1.msra.mxu0 0.0
  %164 = vmatprep.subr.mxu0 0.0
  %165 = vmatpush1.msra.mxu0 0.0
  %166 = vmatprep.subr.mxu0 0.0
  %167 = vmatpush1.msra.mxu0 0.0
  %168 = vmatprep.subr.mxu0 0.0
  %169 = vmatpush1.msra.mxu0 0.0
  %170 = vmatprep.subr.mxu0 0.0
  %171 = vmatpush1.msra.mxu0 0.0
  %172 = vmatprep.subr.mxu0 0.0
  %173 = vmatpush1.msra.mxu0 0.0
  %174 = vmatprep.subr.mxu0 0.0
  %175 = vmatpush1.msra.mxu0 0.0
  %176 = vmatprep.subr.mxu0 0.0
  %177 = vmatpush1.msra.mxu0 0.0
  %178 = vmatprep.subr.mxu0 0.0
  %179 = vmatpush1.msra.mxu0 0.0
  %180 = vmatprep.subr.mxu0 0.0
  %181 = vmatpush1.msra.mxu0 0.0
  %182 = vmatprep.subr.mxu0 0.0
  %183 = vmatpush1.msra.mxu0 0.0
  %184 = vmatprep.subr.mxu0 0.0
  %185 = vmatpush1.msra.mxu0 0.0
  %186 = vmatprep.subr.mxu0 0.0
  %187 = vmatpush1.msra.mxu0 0.0
  %188 = vmatprep.subr.mxu0 0.0
  %189 = vmatpush1.msra.mxu0 0.0
  %190 = vmatprep.subr.mxu0 0.0
  %191 = vmatpush1.msra.mxu0 0.0
  %192 = vmatprep.subr.mxu0 0.0
  %193 = vmatpush1.msra.mxu0 0.0
  %194 = vmatprep.subr.mxu0 0.0
  %195 = vmatpush1.msra.mxu0 0.0
  %196 = vmatprep.subr.mxu0 0.0
  %197 = vmatpush1.msra.mxu0 0.0
  %198 = vmatprep.subr.mxu0 0.0
  %199 = vmatpush1.msra.mxu0 0.0
  %200 = vmatprep.subr.mxu0 0.0
  %201 = vmatpush1.msra.mxu0 0.0
  %202 = vmatprep.mubr.f32.mxu0 0.0
  %v203 = vand.u32 %v45, 4294901760
  %204 = vmatmul.mubr.f32.gmra.mrb[0].mxu0 %v203
  %v205 = vpop.f32.mrb[0].mxu0
  %v206 = vadd.f32 %v125, %v205
  %v207 = vpop.f32.mrb[0].mxu0
  %208 = vdwg.mxu0
  %209 = vmatprep.subr.mxu0 0.0
  %v210 = vand.u32 %v21, 4294901760
  %v211 = vsub.f32 %v21, %v210
  %212 = vmatpush1.msra.mxu0 %v211
  %213 = vmatprep.subr.mxu0 0.0
  %v214 = vand.u32 %v49, 4294901760
  %v215 = vsub.f32 %v49, %v214
  %216 = vmatpush1.msra.mxu0 %v215
  %217 = vmatprep.subr.mxu0 0.0
  %218 = vmatpush1.msra.mxu0 0.0
  %219 = vmatprep.subr.mxu0 0.0
  %220 = vmatpush1.msra.mxu0 0.0
  %221 = vmatprep.subr.mxu0 0.0
  %222 = vmatpush1.msra.mxu0 0.0
  %223 = vmatprep.subr.mxu0 0.0
  %224 = vmatpush1.msra.mxu0 0.0
  %225 = vmatprep.subr.mxu0 0.0
  %226 = vmatpush1.msra.mxu0 0.0
  %227 = vmatprep.subr.mxu0 0.0
  %228 = vmatpush1.msra.mxu0 0.0
  %229 = vmatprep.subr.mxu0 0.0
  %230 = vmatpush1.msra.mxu0 0.0
  %231 = vmatprep.subr.mxu0 0.0
  %232 = vmatpush1.msra.mxu0 0.0
  %233 = vmatprep.subr.mxu0 0.0
  %234 = vmatpush1.msra.mxu0 0.0
  %235 = vmatprep.subr.mxu0 0.0
  %236 = vmatpush1.msra.mxu0 0.0
  %237 = vmatprep.subr.mxu0 0.0
  %238 = vmatpush1.msra.mxu0 0.0
  %239 = vmatprep.subr.mxu0 0.0
  %240 = vmatpush1.msra.mxu0 0.0
  %241 = vmatprep.subr.mxu0 0.0
  %242 = vmatpush1.msra.mxu0 0.0
  %243 = vmatprep.subr.mxu0 0.0
  %244 = vmatpush1.msra.mxu0 0.0
  %245 = vmatprep.subr.mxu0 0.0
  %246 = vmatpush1.msra.mxu0 0.0
  %247 = vmatprep.subr.mxu0 0.0
  %248 = vmatpush1.msra.mxu0 0.0
  %249 = vmatprep.subr.mxu0 0.0
  %250 = vmatpush1.msra.mxu0 0.0
  %251 = vmatprep.subr.mxu0 0.0
  %252 = vmatpush1.msra.mxu0 0.0
  %253 = vmatprep.subr.mxu0 0.0
  %254 = vmatpush1.msra.mxu0 0.0
  %255 = vmatprep.subr.mxu0 0.0
  %256 = vmatpush1.msra.mxu0 0.0
  %257 = vmatprep.subr.mxu0 0.0
  %258 = vmatpush1.msra.mxu0 0.0
  %259 = vmatprep.subr.mxu0 0.0
  %260 = vmatpush1.msra.mxu0 0.0
  %261 = vmatprep.subr.mxu0 0.0
  %262 = vmatpush1.msra.mxu0 0.0
  %263 = vmatprep.subr.mxu0 0.0
  %264 = vmatpush1.msra.mxu0 0.0
  %265 = vmatprep.subr.mxu0 0.0
  %266 = vmatpush1.msra.mxu0 0.0
  %267 = vmatprep.subr.mxu0 0.0
  %268 = vmatpush1.msra.mxu0 0.0
  %269 = vmatprep.subr.mxu0 0.0
  %270 = vmatpush1.msra.mxu0 0.0
  %271 = vmatprep.subr.mxu0 0.0
  %272 = vmatpush1.msra.mxu0 0.0
  %273 = vmatprep.subr.mxu0 0.0
  %274 = vmatpush1.msra.mxu0 0.0
  %275 = vmatprep.subr.mxu0 0.0
  %276 = vmatpush1.msra.mxu0 0.0
  %277 = vmatprep.mubr.f32.mxu0 0.0
  %v278 = vand.u32 %v45, 4294901760
  %v279 = vsub.f32 %v45, %v278
  %280 = vmatmul.mubr.f32.gmra.mrb[0].mxu0 %v279
  %v281 = vpop.f32.mrb[0].mxu0
  %v282 = vadd.f32 %v206, %v281
  %v283 = vpop.f32.mrb[0].mxu0
  %284 = vdwg.mxu0
  %285 = vmatprep.subr.mxu0 0.0
  %v286 = vand.u32 %v21, 4294901760
  %287 = vmatpush1.msra.mxu0 %v286
  %288 = vmatprep.subr.mxu0 0.0
  %v289 = vand.u32 %v49, 4294901760
  %290 = vmatpush1.msra.mxu0 %v289
  %291 = vmatprep.subr.mxu0 0.0
  %292 = vmatpush1.msra.mxu0 0.0
  %293 = vmatprep.subr.mxu0 0.0
  %294 = vmatpush1.msra.mxu0 0.0
  %295 = vmatprep.subr.mxu0 0.0
  %296 = vmatpush1.msra.mxu0 0.0
  %297 = vmatprep.subr.mxu0 0.0
  %298 = vmatpush1.msra.mxu0 0.0
  %299 = vmatprep.subr.mxu0 0.0
  %300 = vmatpush1.msra.mxu0 0.0
  %301 = vmatprep.subr.mxu0 0.0
  %302 = vmatpush1.msra.mxu0 0.0
  %303 = vmatprep.subr.mxu0 0.0
  %304 = vmatpush1.msra.mxu0 0.0
  %305 = vmatprep.subr.mxu0 0.0
  %306 = vmatpush1.msra.mxu0 0.0
  %307 = vmatprep.subr.mxu0 0.0
  %308 = vmatpush1.msra.mxu0 0.0
  %309 = vmatprep.subr.mxu0 0.0
  %310 = vmatpush1.msra.mxu0 0.0
  %311 = vmatprep.subr.mxu0 0.0
  %312 = vmatpush1.msra.mxu0 0.0
  %313 = vmatprep.subr.mxu0 0.0
  %314 = vmatpush1.msra.mxu0 0.0
  %315 = vmatprep.subr.mxu0 0.0
  %316 = vmatpush1.msra.mxu0 0.0
  %317 = vmatprep.subr.mxu0 0.0
  %318 = vmatpush1.msra.mxu0 0.0
  %319 = vmatprep.subr.mxu0 0.0
  %320 = vmatpush1.msra.mxu0 0.0
  %321 = vmatprep.subr.mxu0 0.0
  %322 = vmatpush1.msra.mxu0 0.0
  %323 = vmatprep.subr.mxu0 0.0
  %324 = vmatpush1.msra.mxu0 0.0
  %325 = vmatprep.subr.mxu0 0.0
  %326 = vmatpush1.msra.mxu0 0.0
  %327 = vmatprep.subr.mxu0 0.0
  %328 = vmatpush1.msra.mxu0 0.0
  %329 = vmatprep.subr.mxu0 0.0
  %330 = vmatpush1.msra.mxu0 0.0
  %331 = vmatprep.subr.mxu0 0.0
  %332 = vmatpush1.msra.mxu0 0.0
  %333 = vmatprep.subr.mxu0 0.0
  %334 = vmatpush1.msra.mxu0 0.0
  %335 = vmatprep.subr.mxu0 0.0
  %336 = vmatpush1.msra.mxu0 0.0
  %337 = vmatprep.subr.mxu0 0.0
  %338 = vmatpush1.msra.mxu0 0.0
  %339 = vmatprep.subr.mxu0 0.0
  %340 = vmatpush1.msra.mxu0 0.0
  %341 = vmatprep.subr.mxu0 0.0
  %342 = vmatpush1.msra.mxu0 0.0
  %343 = vmatprep.subr.mxu0 0.0
  %344 = vmatpush1.msra.mxu0 0.0
  %345 = vmatprep.subr.mxu0 0.0
  %346 = vmatpush1.msra.mxu0 0.0
  %347 = vmatprep.subr.mxu0 0.0
  %348 = vmatpush1.msra.mxu0 0.0
  %349 = vmatprep.subr.mxu0 0.0
  %350 = vmatpush1.msra.mxu0 0.0
  %351 = vmatprep.mubr.f32.mxu0 0.0
  %v352 = vand.u32 %v45, 4294901760
  %v353 = vsub.f32 %v45, %v352
  %v354 = vand.u32 %v353, 4294901760
  %355 = vmatmul.mubr.f32.gmra.mrb[0].mxu0 %v354
  %v356 = vpop.f32.mrb[0].mxu0
  %v357 = vadd.f32 %v282, %v356
  %v358 = vpop.f32.mrb[0].mxu0
  %359 = vdwg.mxu0
  %360 = vmatprep.subr.mxu0 0.0
  %v361 = vand.u32 %v21, 4294901760
  %v362 = vsub.f32 %v21, %v361
  %v363 = vand.u32 %v362, 4294901760
  %364 = vmatpush1.msra.mxu0 %v363
  %365 = vmatprep.subr.mxu0 0.0
  %v366 = vand.u32 %v49, 4294901760
  %v367 = vsub.f32 %v49, %v366
  %v368 = vand.u32 %v367, 4294901760
  %369 = vmatpush1.msra.mxu0 %v368
  %370 = vmatprep.subr.mxu0 0.0
  %371 = vmatpush1.msra.mxu0 0.0
  %372 = vmatprep.subr.mxu0 0.0
  %373 = vmatpush1.msra.mxu0 0.0
  %374 = vmatprep.subr.mxu0 0.0
  %375 = vmatpush1.msra.mxu0 0.0
  %376 = vmatprep.subr.mxu0 0.0
  %377 = vmatpush1.msra.mxu0 0.0
  %378 = vmatprep.subr.mxu0 0.0
  %379 = vmatpush1.msra.mxu0 0.0
  %380 = vmatprep.subr.mxu0 0.0
  %381 = vmatpush1.msra.mxu0 0.0
  %382 = vmatprep.subr.mxu0 0.0
  %383 = vmatpush1.msra.mxu0 0.0
  %384 = vmatprep.subr.mxu0 0.0
  %385 = vmatpush1.msra.mxu0 0.0
  %386 = vmatprep.subr.mxu0 0.0
  %387 = vmatpush1.msra.mxu0 0.0
  %388 = vmatprep.subr.mxu0 0.0
  %389 = vmatpush1.msra.mxu0 0.0
  %390 = vmatprep.subr.mxu0 0.0
  %391 = vmatpush1.msra.mxu0 0.0
  %392 = vmatprep.subr.mxu0 0.0
  %393 = vmatpush1.msra.mxu0 0.0
  %394 = vmatprep.subr.mxu0 0.0
  %395 = vmatpush1.msra.mxu0 0.0
  %396 = vmatprep.subr.mxu0 0.0
  %397 = vmatpush1.msra.mxu0 0.0
  %398 = vmatprep.subr.mxu0 0.0
  %399 = vmatpush1.msra.mxu0 0.0
  %400 = vmatprep.subr.mxu0 0.0
  %401 = vmatpush1.msra.mxu0 0.0
  %402 = vmatprep.subr.mxu0 0.0
  %403 = vmatpush1.msra.mxu0 0.0
  %404 = vmatprep.subr.mxu0 0.0
  %405 = vmatpush1.msra.mxu0 0.0
  %406 = vmatprep.subr.mxu0 0.0
  %407 = vmatpush1.msra.mxu0 0.0
  %408 = vmatprep.subr.mxu0 0.0
  %409 = vmatpush1.msra.mxu0 0.0
  %410 = vmatprep.subr.mxu0 0.0
  %411 = vmatpush1.msra.mxu0 0.0
  %412 = vmatprep.subr.mxu0 0.0
  %413 = vmatpush1.msra.mxu0 0.0
  %414 = vmatprep.subr.mxu0 0.0
  %415 = vmatpush1.msra.mxu0 0.0
  %416 = vmatprep.subr.mxu0 0.0
  %417 = vmatpush1.msra.mxu0 0.0
  %418 = vmatprep.subr.mxu0 0.0
  %419 = vmatpush1.msra.mxu0 0.0
  %420 = vmatprep.subr.mxu0 0.0
  %421 = vmatpush1.msra.mxu0 0.0
  %422 = vmatprep.subr.mxu0 0.0
  %423 = vmatpush1.msra.mxu0 0.0
  %424 = vmatprep.subr.mxu0 0.0
  %425 = vmatpush1.msra.mxu0 0.0
  %426 = vmatprep.subr.mxu0 0.0
  %427 = vmatpush1.msra.mxu0 0.0
  %428 = vmatprep.subr.mxu0 0.0
  %429 = vmatpush1.msra.mxu0 0.0
  %430 = vmatprep.mubr.f32.mxu0 0.0
  %v431 = vand.u32 %v45, 4294901760
  %432 = vmatmul.mubr.f32.gmra.mrb[0].mxu0 %v431
  %v433 = vpop.f32.mrb[0].mxu0
  %v434 = vadd.f32 %v357, %v433
  %v435 = vpop.f32.mrb[0].mxu0
  %436 = vdwg.mxu0
  %437 = vmatprep.subr.mxu0 0.0
  %v438 = vand.u32 %v21, 4294901760
  %439 = vmatpush1.msra.mxu0 %v438
  %440 = vmatprep.subr.mxu0 0.0
  %v441 = vand.u32 %v49, 4294901760
  %442 = vmatpush1.msra.mxu0 %v441
  %443 = vmatprep.subr.mxu0 0.0
  %444 = vmatpush1.msra.mxu0 0.0
  %445 = vmatprep.subr.mxu0 0.0
  %446 = vmatpush1.msra.mxu0 0.0
  %447 = vmatprep.subr.mxu0 0.0
  %448 = vmatpush1.msra.mxu0 0.0
  %449 = vmatprep.subr.mxu0 0.0
  %450 = vmatpush1.msra.mxu0 0.0
  %451 = vmatprep.subr.mxu0 0.0
  %452 = vmatpush1.msra.mxu0 0.0
  %453 = vmatprep.subr.mxu0 0.0
  %454 = vmatpush1.msra.mxu0 0.0
  %455 = vmatprep.subr.mxu0 0.0
  %456 = vmatpush1.msra.mxu0 0.0
  %457 = vmatprep.subr.mxu0 0.0
  %458 = vmatpush1.msra.mxu0 0.0
  %459 = vmatprep.subr.mxu0 0.0
  %460 = vmatpush1.msra.mxu0 0.0
  %461 = vmatprep.subr.mxu0 0.0
  %462 = vmatpush1.msra.mxu0 0.0
  %463 = vmatprep.subr.mxu0 0.0
  %464 = vmatpush1.msra.mxu0 0.0
  %465 = vmatprep.subr.mxu0 0.0
  %466 = vmatpush1.msra.mxu0 0.0
  %467 = vmatprep.subr.mxu0 0.0
  %468 = vmatpush1.msra.mxu0 0.0
  %469 = vmatprep.subr.mxu0 0.0
  %470 = vmatpush1.msra.mxu0 0.0
  %471 = vmatprep.subr.mxu0 0.0
  %472 = vmatpush1.msra.mxu0 0.0
  %473 = vmatprep.subr.mxu0 0.0
  %474 = vmatpush1.msra.mxu0 0.0
  %475 = vmatprep.subr.mxu0 0.0
  %476 = vmatpush1.msra.mxu0 0.0
  %477 = vmatprep.subr.mxu0 0.0
  %478 = vmatpush1.msra.mxu0 0.0
  %479 = vmatprep.subr.mxu0 0.0
  %480 = vmatpush1.msra.mxu0 0.0
  %481 = vmatprep.subr.mxu0 0.0
  %482 = vmatpush1.msra.mxu0 0.0
  %483 = vmatprep.subr.mxu0 0.0
  %484 = vmatpush1.msra.mxu0 0.0
  %485 = vmatprep.subr.mxu0 0.0
  %486 = vmatpush1.msra.mxu0 0.0
  %487 = vmatprep.subr.mxu0 0.0
  %488 = vmatpush1.msra.mxu0 0.0
  %489 = vmatprep.subr.mxu0 0.0
  %490 = vmatpush1.msra.mxu0 0.0
  %491 = vmatprep.subr.mxu0 0.0
  %492 = vmatpush1.msra.mxu0 0.0
  %493 = vmatprep.subr.mxu0 0.0
  %494 = vmatpush1.msra.mxu0 0.0
  %495 = vmatprep.subr.mxu0 0.0
  %496 = vmatpush1.msra.mxu0 0.0
  %497 = vmatprep.subr.mxu0 0.0
  %498 = vmatpush1.msra.mxu0 0.0
  %499 = vmatprep.subr.mxu0 0.0
  %500 = vmatpush1.msra.mxu0 0.0
  %501 = vmatprep.subr.mxu0 0.0
  %502 = vmatpush1.msra.mxu0 0.0
  %503 = vmatprep.mubr.f32.mxu0 0.0
  %v504 = vand.u32 %v45, 4294901760
  %505 = vmatmul.mubr.f32.gmra.mrb[0].mxu0 %v504
  %v506 = vpop.f32.mrb[0].mxu0
  %v507 = vadd.f32 %v434, %v506
  %v508 = vpop.f32.mrb[0].mxu0
  %509 = vdwg.mxu0
  %v510 = vadd.f32 %v507, 0.0
  %vm511 = vcmp.gt.f32.partialorder %v510, 1.0
  %v512 = vsel %vm511, 1, 0
  %v513 = vcvt.s32.f32 %v512
  %v514 = vmul.f32 %v510, 0.95
  %v515 = vadd.f32 %v514, %v507
  %v516 = vsub.f32 %v515, %v513
  %vm517 = vcmp.gt.f32.partialorder %v516, 1.0
  %v518 = vsel %vm517, 1, 0
  %v519 = vcvt.s32.f32 %v518
  %v520 = vmul.f32 %v516, 0.95
  %v521 = vadd.f32 %v520, %v507
  %v522 = vsub.f32 %v521, %v519
  %vm523 = vcmp.gt.f32.partialorder %v522, 1.0
  %v524 = vsel %vm523, 1, 0
  %v525 = vcvt.s32.f32 %v524
  %v526 = vmul.f32 %v522, 0.95
  %v527 = vadd.f32 %v526, %v507
  %v528 = vsub.f32 %v527, %v525
  %vm529 = vcmp.gt.f32.partialorder %v528, 1.0
  %v530 = vsel %vm529, 1, 0
  %v531 = vcvt.s32.f32 %v530
  %v532 = vmul.f32 %v528, 0.95
  %v533 = vadd.f32 %v532, %v507
  %v534 = vsub.f32 %v533, %v531
  %vm535 = vcmp.gt.f32.partialorder %v534, 1.0
  %v536 = vsel %vm535, 1, 0
  %v537 = vcvt.s32.f32 %v536
  %v538 = vmul.f32 %v534, 0.95
  %v539 = vadd.f32 %v538, %v507
  %v540 = vsub.f32 %v539, %v537
  %vm541 = vcmp.gt.f32.partialorder %v540, 1.0
  %v542 = vsel %vm541, 1, 0
  %v543 = vcvt.s32.f32 %v542
  %v544 = vmul.f32 %v540, 0.95
  %v545 = vadd.f32 %v544, %v507
  %v546 = vsub.f32 %v545, %v543
  %vm547 = vcmp.gt.f32.partialorder %v546, 1.0
  %v548 = vsel %vm547, 1, 0
  %v549 = vcvt.s32.f32 %v548
  %v550 = vmul.f32 %v546, 0.95
  %v551 = vadd.f32 %v550, %v507
  %v552 = vsub.f32 %v551, %v549
  %vm553 = vcmp.gt.f32.partialorder %v552, 1.0
  %v554 = vsel %vm553, 1, 0
  %v555 = vcvt.s32.f32 %v554
  %v556 = vmul.f32 %v552, 0.95
  %v557 = vadd.f32 %v556, %v507
  %v558 = vsub.f32 %v557, %v555
  %vm559 = vcmp.gt.f32.partialorder %v558, 1.0
  %v560 = vsel %vm559, 1, 0
  %v561 = vcvt.s32.f32 %v560
  %v562 = vmul.f32 %v558, 0.95
  %v563 = vadd.f32 %v562, %v507
  %v564 = vsub.f32 %v563, %v561
  %vm565 = vcmp.gt.f32.partialorder %v564, 1.0
  %v566 = vsel %vm565, 1, 0
  %v567 = vcvt.s32.f32 %v566
  %v568 = vmul.f32 %v564, 0.95
  %v569 = vadd.f32 %v568, %v507
  %v570 = vsub.f32 %v569, %v567
  %vm571 = vcmp.gt.f32.partialorder %v570, 1.0
  %v572 = vsel %vm571, 1, 0
  %v573 = vcvt.s32.f32 %v572
  %v574 = vmul.f32 %v570, 0.95
  %v575 = vadd.f32 %v574, %v507
  %v576 = vsub.f32 %v575, %v573
  %vm577 = vcmp.gt.f32.partialorder %v576, 1.0
  %v578 = vsel %vm577, 1, 0
  %v579 = vcvt.s32.f32 %v578
  %v580 = vmul.f32 %v576, 0.95
  %v581 = vadd.f32 %v580, %v507
  %v582 = vsub.f32 %v581, %v579
  %vm583 = vcmp.gt.f32.partialorder %v582, 1.0
  %v584 = vsel %vm583, 1, 0
  %v585 = vcvt.s32.f32 %v584
  %v586 = vmul.f32 %v582, 0.95
  %v587 = vadd.f32 %v586, %v507
  %v588 = vsub.f32 %v587, %v585
  %vm589 = vcmp.gt.f32.partialorder %v588, 1.0
  %v590 = vsel %vm589, 1, 0
  %v591 = vcvt.s32.f32 %v590
  %v592 = vmul.f32 %v588, 0.95
  %v593 = vadd.f32 %v592, %v507
  %v594 = vsub.f32 %v593, %v591
  %vm595 = vcmp.gt.f32.partialorder %v594, 1.0
  %v596 = vsel %vm595, 1, 0
  %v597 = vcvt.s32.f32 %v596
  %v598 = vmul.f32 %v594, 0.95
  %v599 = vadd.f32 %v598, %v507
  %v600 = vsub.f32 %v599, %v597
  %vm601 = vcmp.gt.f32.partialorder %v600, 1.0
  %v602 = vsel %vm601, 1, 0
  %v603 = vcvt.s32.f32 %v602
  %v604 = vmul.f32 %v600, 0.95
  %v605 = vadd.f32 %v604, %v507
  %v606 = vsub.f32 %v605, %v603
  %vm607 = vcmp.gt.f32.partialorder %v606, 1.0
  %v608 = vsel %vm607, 1, 0
  %v609 = vcvt.s32.f32 %v608
  %v610 = vmul.f32 %v606, 0.95
  %v611 = vadd.f32 %v610, %v507
  %v612 = vsub.f32 %v611, %v609
  %vm613 = vcmp.gt.f32.partialorder %v612, 1.0
  %v614 = vsel %vm613, 1, 0
  %v615 = vcvt.s32.f32 %v614
  %v616 = vmul.f32 %v612, 0.95
  %v617 = vadd.f32 %v616, %v507
  %v618 = vsub.f32 %v617, %v615
  %vm619 = vcmp.gt.f32.partialorder %v618, 1.0
  %v620 = vsel %vm619, 1, 0
  %v621 = vcvt.s32.f32 %v620
  %v622 = vmul.f32 %v618, 0.95
  %v623 = vadd.f32 %v622, %v507
  %v624 = vsub.f32 %v623, %v621
  %vm625 = vcmp.gt.f32.partialorder %v624, 1.0
  %v626 = vsel %vm625, 1, 0
  %v627 = vcvt.s32.f32 %v626
  %v628 = vmul.f32 %v624, 0.95
  %v629 = vadd.f32 %v628, %v507
  %v630 = vsub.f32 %v629, %v627
  %vm631 = vcmp.gt.f32.partialorder %v630, 1.0
  %v632 = vsel %vm631, 1, 0
  %v633 = vcvt.s32.f32 %v632
  %v634 = vmul.f32 %v630, 0.95
  %v635 = vadd.f32 %v634, %v507
  %v636 = vsub.f32 %v635, %v633
  %vm637 = vcmp.gt.f32.partialorder %v636, 1.0
  %v638 = vsel %vm637, 1, 0
  %v639 = vcvt.s32.f32 %v638
  %v640 = vmul.f32 %v636, 0.95
  %v641 = vadd.f32 %v640, %v507
  %v642 = vsub.f32 %v641, %v639
  %vm643 = vcmp.gt.f32.partialorder %v642, 1.0
  %v644 = vsel %vm643, 1, 0
  %v645 = vcvt.s32.f32 %v644
  %v646 = vmul.f32 %v642, 0.95
  %v647 = vadd.f32 %v646, %v507
  %v648 = vsub.f32 %v647, %v645
  %vm649 = vcmp.gt.f32.partialorder %v648, 1.0
  %v650 = vsel %vm649, 1, 0
  %v651 = vcvt.s32.f32 %v650
  %v652 = vmul.f32 %v648, 0.95
  %v653 = vadd.f32 %v652, %v507
  %v654 = vsub.f32 %v653, %v651
  %vm655 = vcmp.gt.f32.partialorder %v654, 1.0
  %v656 = vsel %vm655, 1, 0
  %v657 = vcvt.s32.f32 %v656
  %v659 = vlaneseq
  %v660 = vshrl.u32 %v659, 7
  %v661 = vsub.s32 0, %v660
  %v662 = vrot.slane %v36, %v661
  %vm664 = vcmask 736256
  %v666 = vsel %vm664, %v513, 0
  %v669 = vsel %vm664, %v519, 0
  %v672 = vsel %vm664, %v525, 0
  %v675 = vsel %vm664, %v531, 0
  %v678 = vsel %vm664, %v537, 0
  %v681 = vsel %vm664, %v543, 0
  %v684 = vsel %vm664, %v549, 0
  %v687 = vsel %vm664, %v555, 0
  %v690 = vsel %vm664, %v561, 0
  %v693 = vsel %vm664, %v567, 0
  %v696 = vsel %vm664, %v573, 0
  %v699 = vsel %vm664, %v579, 0
  %v702 = vsel %vm664, %v585, 0
  %v705 = vsel %vm664, %v591, 0
  %v708 = vsel %vm664, %v597, 0
  %v711 = vsel %vm664, %v603, 0
  %v714 = vsel %vm664, %v609, 0
  %v717 = vsel %vm664, %v615, 0
  %v720 = vsel %vm664, %v621, 0
  %v723 = vsel %vm664, %v627, 0
  %v726 = vsel %vm664, %v633, 0
  %v729 = vsel %vm664, %v639, 0
  %v732 = vsel %vm664, %v645, 0
  %v735 = vsel %vm664, %v651, 0
  %v738 = vsel %vm664, %v657, 0
  %vm740 = vcmask 1041408
  %v742 = vsel %vm740, %v35, 0
  %744 = vmatprep.subr.mxu0 0.0
  %v745 = vand.u32 %v24, 4294901760
  %746 = vmatpush1.msra.mxu0 %v745
  %747 = vmatprep.subr.mxu0 0.0
  %v748 = vand.u32 %v25, 4294901760
  %749 = vmatpush1.msra.mxu0 %v748
  %750 = vmatprep.subr.mxu0 0.0
  %v751 = vand.u32 %v26, 4294901760
  %752 = vmatpush1.msra.mxu0 %v751
  %753 = vmatprep.subr.mxu0 0.0
  %v754 = vand.u32 %v27, 4294901760
  %755 = vmatpush1.msra.mxu0 %v754
  %756 = vmatprep.subr.mxu0 0.0
  %v757 = vand.u32 %v28, 4294901760
  %758 = vmatpush1.msra.mxu0 %v757
  %759 = vmatprep.subr.mxu0 0.0
  %v760 = vand.u32 %v29, 4294901760
  %761 = vmatpush1.msra.mxu0 %v760
  %762 = vmatprep.subr.mxu0 0.0
  %v763 = vand.u32 %v30, 4294901760
  %764 = vmatpush1.msra.mxu0 %v763
  %765 = vmatprep.subr.mxu0 0.0
  %v766 = vand.u32 %v31, 4294901760
  %767 = vmatpush1.msra.mxu0 %v766
  %768 = vmatprep.subr.mxu0 0.0
  %v769 = vand.u32 %v32, 4294901760
  %770 = vmatpush1.msra.mxu0 %v769
  %771 = vmatprep.subr.mxu0 0.0
  %v772 = vand.u32 %v33, 4294901760
  %773 = vmatpush1.msra.mxu0 %v772
  %774 = vmatprep.subr.mxu0 0.0
  %v775 = vand.u32 %v34, 4294901760
  %776 = vmatpush1.msra.mxu0 %v775
  %777 = vmatprep.subr.mxu0 0.0
  %v778 = vand.u32 %v742, 4294901760
  %779 = vmatpush1.msra.mxu0 %v778
  %780 = vmatprep.subr.mxu0 0.0
  %781 = vmatpush1.msra.mxu0 0.0
  %782 = vmatprep.subr.mxu0 0.0
  %783 = vmatpush1.msra.mxu0 0.0
  %784 = vmatprep.subr.mxu0 0.0
  %785 = vmatpush1.msra.mxu0 0.0
  %786 = vmatprep.subr.mxu0 0.0
  %787 = vmatpush1.msra.mxu0 0.0
  %788 = vmatprep.subr.mxu0 0.0
  %789 = vmatpush1.msra.mxu0 0.0
  %790 = vmatprep.subr.mxu0 0.0
  %791 = vmatpush1.msra.mxu0 0.0
  %792 = vmatprep.subr.mxu0 0.0
  %793 = vmatpush1.msra.mxu0 0.0
  %794 = vmatprep.subr.mxu0 0.0
  %795 = vmatpush1.msra.mxu0 0.0
  %796 = vmatprep.subr.mxu0 0.0
  %797 = vmatpush1.msra.mxu0 0.0
  %798 = vmatprep.subr.mxu0 0.0
  %799 = vmatpush1.msra.mxu0 0.0
  %800 = vmatprep.subr.mxu0 0.0
  %801 = vmatpush1.msra.mxu0 0.0
  %802 = vmatprep.subr.mxu0 0.0
  %803 = vmatpush1.msra.mxu0 0.0
  %804 = vmatprep.subr.mxu0 0.0
  %805 = vmatpush1.msra.mxu0 0.0
  %806 = vmatprep.subr.mxu0 0.0
  %807 = vmatpush1.msra.mxu0 0.0
  %808 = vmatprep.subr.mxu0 0.0
  %809 = vmatpush1.msra.mxu0 0.0
  %810 = vmatprep.subr.mxu0 0.0
  %811 = vmatpush1.msra.mxu0 0.0
  %812 = vmatprep.subr.mxu0 0.0
  %813 = vmatpush1.msra.mxu0 0.0
  %814 = vmatprep.subr.mxu0 0.0
  %815 = vmatpush1.msra.mxu0 0.0
  %816 = vmatprep.subr.mxu0 0.0
  %817 = vmatpush1.msra.mxu0 0.0
  %818 = vmatprep.subr.mxu0 0.0
  %819 = vmatpush1.msra.mxu0 0.0
  %820 = vmatprep.mubr.f32.mxu0 0.0
  %v821 = vand.u32 %v666, 4294901760
  %v822 = vsub.f32 %v666, %v821
  %v823 = vand.u32 %v822, 4294901760
  %v824 = vsub.f32 %v822, %v823
  %v825 = vand.u32 %v824, 4294901760
  %826 = vmatmul.mubr.f32.gmra.mrb[0].mxu0 %v825
  %v827 = vpop.f32.mrb[0].mxu0
  %v828 = vadd.f32 %v662, %v827
  %v829 = vpop.f32.mrb[0].mxu0
  %830 = vmatprep.mubr.f32.mxu0 0.0
  %v831 = vand.u32 %v669, 4294901760
  %v832 = vsub.f32 %v669, %v831
  %v833 = vand.u32 %v832, 4294901760
  %v834 = vsub.f32 %v832, %v833
  %v835 = vand.u32 %v834, 4294901760
  %836 = vmatmul.mubr.f32.gmra.mrb[0].mxu0 %v835
  %v837 = vpop.f32.mrb[0].mxu0
  %v838 = vadd.f32 %v662, %v837
  %v839 = vpop.f32.mrb[0].mxu0
  %840 = vmatprep.mubr.f32.mxu0 0.0
  %v841 = vand.u32 %v672, 4294901760
  %v842 = vsub.f32 %v672, %v841
  %v843 = vand.u32 %v842, 4294901760
  %v844 = vsub.f32 %v842, %v843
  %v845 = vand.u32 %v844, 4294901760
  %846 = vmatmul.mubr.f32.gmra.mrb[0].mxu0 %v845
  %v847 = vpop.f32.mrb[0].mxu0
  %v848 = vadd.f32 %v662, %v847
  %v849 = vpop.f32.mrb[0].mxu0
  %850 = vmatprep.mubr.f32.mxu0 0.0
  %v851 = vand.u32 %v675, 4294901760
  %v852 = vsub.f32 %v675, %v851
  %v853 = vand.u32 %v852, 4294901760
  %v854 = vsub.f32 %v852, %v853
  %v855 = vand.u32 %v854, 4294901760
  %856 = vmatmul.mubr.f32.gmra.mrb[0].mxu0 %v855
  %v857 = vpop.f32.mrb[0].mxu0
  %v858 = vadd.f32 %v662, %v857
  %v859 = vpop.f32.mrb[0].mxu0
  %860 = vmatprep.mubr.f32.mxu0 0.0
  %v861 = vand.u32 %v678, 4294901760
  %v862 = vsub.f32 %v678, %v861
  %v863 = vand.u32 %v862, 4294901760
  %v864 = vsub.f32 %v862, %v863
  %v865 = vand.u32 %v864, 4294901760
  %866 = vmatmul.mubr.f32.gmra.mrb[0].mxu0 %v865
  %v867 = vpop.f32.mrb[0].mxu0
  %v868 = vadd.f32 %v662, %v867
  %v869 = vpop.f32.mrb[0].mxu0
  %870 = vmatprep.mubr.f32.mxu0 0.0
  %v871 = vand.u32 %v681, 4294901760
  %v872 = vsub.f32 %v681, %v871
  %v873 = vand.u32 %v872, 4294901760
  %v874 = vsub.f32 %v872, %v873
  %v875 = vand.u32 %v874, 4294901760
  %876 = vmatmul.mubr.f32.gmra.mrb[0].mxu0 %v875
  %v877 = vpop.f32.mrb[0].mxu0
  %v878 = vadd.f32 %v662, %v877
  %v879 = vpop.f32.mrb[0].mxu0
  %880 = vmatprep.mubr.f32.mxu0 0.0
  %v881 = vand.u32 %v684, 4294901760
  %v882 = vsub.f32 %v684, %v881
  %v883 = vand.u32 %v882, 4294901760
  %v884 = vsub.f32 %v882, %v883
  %v885 = vand.u32 %v884, 4294901760
  %886 = vmatmul.mubr.f32.gmra.mrb[0].mxu0 %v885
  %v887 = vpop.f32.mrb[0].mxu0
  %v888 = vadd.f32 %v662, %v887
  %v889 = vpop.f32.mrb[0].mxu0
  %890 = vmatprep.mubr.f32.mxu0 0.0
  %v891 = vand.u32 %v687, 4294901760
  %v892 = vsub.f32 %v687, %v891
  %v893 = vand.u32 %v892, 4294901760
  %v894 = vsub.f32 %v892, %v893
  %v895 = vand.u32 %v894, 4294901760
  %896 = vmatmul.mubr.f32.gmra.mrb[0].mxu0 %v895
  %v897 = vpop.f32.mrb[0].mxu0
  %v898 = vadd.f32 %v662, %v897
  %v899 = vpop.f32.mrb[0].mxu0
  %900 = vmatprep.mubr.f32.mxu0 0.0
  %v901 = vand.u32 %v690, 4294901760
  %v902 = vsub.f32 %v690, %v901
  %v903 = vand.u32 %v902, 4294901760
  %v904 = vsub.f32 %v902, %v903
  %v905 = vand.u32 %v904, 4294901760
  %906 = vmatmul.mubr.f32.gmra.mrb[0].mxu0 %v905
  %v907 = vpop.f32.mrb[0].mxu0
  %v908 = vadd.f32 %v662, %v907
  %v909 = vpop.f32.mrb[0].mxu0
  %910 = vmatprep.mubr.f32.mxu0 0.0
  %v911 = vand.u32 %v693, 4294901760
  %v912 = vsub.f32 %v693, %v911
  %v913 = vand.u32 %v912, 4294901760
  %v914 = vsub.f32 %v912, %v913
  %v915 = vand.u32 %v914, 4294901760
  %916 = vmatmul.mubr.f32.gmra.mrb[0].mxu0 %v915
  %v917 = vpop.f32.mrb[0].mxu0
  %v918 = vadd.f32 %v662, %v917
  %v919 = vpop.f32.mrb[0].mxu0
  %920 = vmatprep.mubr.f32.mxu0 0.0
  %v921 = vand.u32 %v696, 4294901760
  %v922 = vsub.f32 %v696, %v921
  %v923 = vand.u32 %v922, 4294901760
  %v924 = vsub.f32 %v922, %v923
  %v925 = vand.u32 %v924, 4294901760
  %926 = vmatmul.mubr.f32.gmra.mrb[0].mxu0 %v925
  %v927 = vpop.f32.mrb[0].mxu0
  %v928 = vadd.f32 %v662, %v927
  %v929 = vpop.f32.mrb[0].mxu0
  %930 = vmatprep.mubr.f32.mxu0 0.0
  %v931 = vand.u32 %v699, 4294901760
  %v932 = vsub.f32 %v699, %v931
  %v933 = vand.u32 %v932, 4294901760
  %v934 = vsub.f32 %v932, %v933
  %v935 = vand.u32 %v934, 4294901760
  %936 = vmatmul.mubr.f32.gmra.mrb[0].mxu0 %v935
  %v937 = vpop.f32.mrb[0].mxu0
  %v938 = vadd.f32 %v662, %v937
  %v939 = vpop.f32.mrb[0].mxu0
  %940 = vmatprep.mubr.f32.mxu0 0.0
  %v941 = vand.u32 %v702, 4294901760
  %v942 = vsub.f32 %v702, %v941
  %v943 = vand.u32 %v942, 4294901760
  %v944 = vsub.f32 %v942, %v943
  %v945 = vand.u32 %v944, 4294901760
  %946 = vmatmul.mubr.f32.gmra.mrb[0].mxu0 %v945
  %v947 = vpop.f32.mrb[0].mxu0
  %v948 = vadd.f32 %v662, %v947
  %v949 = vpop.f32.mrb[0].mxu0
  %950 = vmatprep.mubr.f32.mxu0 0.0
  %v951 = vand.u32 %v705, 4294901760
  %v952 = vsub.f32 %v705, %v951
  %v953 = vand.u32 %v952, 4294901760
  %v954 = vsub.f32 %v952, %v953
  %v955 = vand.u32 %v954, 4294901760
  %956 = vmatmul.mubr.f32.gmra.mrb[0].mxu0 %v955
  %v957 = vpop.f32.mrb[0].mxu0
  %v958 = vadd.f32 %v662, %v957
  %v959 = vpop.f32.mrb[0].mxu0
  %960 = vmatprep.mubr.f32.mxu0 0.0
  %v961 = vand.u32 %v708, 4294901760
  %v962 = vsub.f32 %v708, %v961
  %v963 = vand.u32 %v962, 4294901760
  %v964 = vsub.f32 %v962, %v963
  %v965 = vand.u32 %v964, 4294901760
  %966 = vmatmul.mubr.f32.gmra.mrb[0].mxu0 %v965
  %v967 = vpop.f32.mrb[0].mxu0
  %v968 = vadd.f32 %v662, %v967
  %v969 = vpop.f32.mrb[0].mxu0
  %970 = vmatprep.mubr.f32.mxu0 0.0
  %v971 = vand.u32 %v711, 4294901760
  %v972 = vsub.f32 %v711, %v971
  %v973 = vand.u32 %v972, 4294901760
  %v974 = vsub.f32 %v972, %v973
  %v975 = vand.u32 %v974, 4294901760
  %976 = vmatmul.mubr.f32.gmra.mrb[0].mxu0 %v975
  %v977 = vpop.f32.mrb[0].mxu0
  %v978 = vadd.f32 %v662, %v977
  %v979 = vpop.f32.mrb[0].mxu0
  %980 = vmatprep.mubr.f32.mxu0 0.0
  %v981 = vand.u32 %v714, 4294901760
  %v982 = vsub.f32 %v714, %v981
  %v983 = vand.u32 %v982, 4294901760
  %v984 = vsub.f32 %v982, %v983
  %v985 = vand.u32 %v984, 4294901760
  %986 = vmatmul.mubr.f32.gmra.mrb[0].mxu0 %v985
  %v987 = vpop.f32.mrb[0].mxu0
  %v988 = vadd.f32 %v662, %v987
  %v989 = vpop.f32.mrb[0].mxu0
  %990 = vmatprep.mubr.f32.mxu0 0.0
  %v991 = vand.u32 %v717, 4294901760
  %v992 = vsub.f32 %v717, %v991
  %v993 = vand.u32 %v992, 4294901760
  %v994 = vsub.f32 %v992, %v993
  %v995 = vand.u32 %v994, 4294901760
  %996 = vmatmul.mubr.f32.gmra.mrb[0].mxu0 %v995
  %v997 = vpop.f32.mrb[0].mxu0
  %v998 = vadd.f32 %v662, %v997
  %v999 = vpop.f32.mrb[0].mxu0
  %1000 = vmatprep.mubr.f32.mxu0 0.0
  %v1001 = vand.u32 %v720, 4294901760
  %v1002 = vsub.f32 %v720, %v1001
  %v1003 = vand.u32 %v1002, 4294901760
  %v1004 = vsub.f32 %v1002, %v1003
  %v1005 = vand.u32 %v1004, 4294901760
  %1006 = vmatmul.mubr.f32.gmra.mrb[0].mxu0 %v1005
  %v1007 = vpop.f32.mrb[0].mxu0
  %v1008 = vadd.f32 %v662, %v1007
  %v1009 = vpop.f32.mrb[0].mxu0
  %1010 = vmatprep.mubr.f32.mxu0 0.0
  %v1011 = vand.u32 %v723, 4294901760
  %v1012 = vsub.f32 %v723, %v1011
  %v1013 = vand.u32 %v1012, 4294901760
  %v1014 = vsub.f32 %v1012, %v1013
  %v1015 = vand.u32 %v1014, 4294901760
  %1016 = vmatmul.mubr.f32.gmra.mrb[0].mxu0 %v1015
  %v1017 = vpop.f32.mrb[0].mxu0
  %v1018 = vadd.f32 %v662, %v1017
  %v1019 = vpop.f32.mrb[0].mxu0
  %1020 = vmatprep.mubr.f32.mxu0 0.0
  %v1021 = vand.u32 %v726, 4294901760
  %v1022 = vsub.f32 %v726, %v1021
  %v1023 = vand.u32 %v1022, 4294901760
  %v1024 = vsub.f32 %v1022, %v1023
  %v1025 = vand.u32 %v1024, 4294901760
  %1026 = vmatmul.mubr.f32.gmra.mrb[0].mxu0 %v1025
  %v1027 = vpop.f32.mrb[0].mxu0
  %v1028 = vadd.f32 %v662, %v1027
  %v1029 = vpop.f32.mrb[0].mxu0
  %1030 = vmatprep.mubr.f32.mxu0 0.0
  %v1031 = vand.u32 %v729, 4294901760
  %v1032 = vsub.f32 %v729, %v1031
  %v1033 = vand.u32 %v1032, 4294901760
  %v1034 = vsub.f32 %v1032, %v1033
  %v1035 = vand.u32 %v1034, 4294901760
  %1036 = vmatmul.mubr.f32.gmra.mrb[0].mxu0 %v1035
  %v1037 = vpop.f32.mrb[0].mxu0
  %v1038 = vadd.f32 %v662, %v1037
  %v1039 = vpop.f32.mrb[0].mxu0
  %1040 = vmatprep.mubr.f32.mxu0 0.0
  %v1041 = vand.u32 %v732, 4294901760
  %v1042 = vsub.f32 %v732, %v1041
  %v1043 = vand.u32 %v1042, 4294901760
  %v1044 = vsub.f32 %v1042, %v1043
  %v1045 = vand.u32 %v1044, 4294901760
  %1046 = vmatmul.mubr.f32.gmra.mrb[0].mxu0 %v1045
  %v1047 = vpop.f32.mrb[0].mxu0
  %v1048 = vadd.f32 %v662, %v1047
  %v1049 = vpop.f32.mrb[0].mxu0
  %1050 = vmatprep.mubr.f32.mxu0 0.0
  %v1051 = vand.u32 %v735, 4294901760
  %v1052 = vsub.f32 %v735, %v1051
  %v1053 = vand.u32 %v1052, 4294901760
  %v1054 = vsub.f32 %v1052, %v1053
  %v1055 = vand.u32 %v1054, 4294901760
  %1056 = vmatmul.mubr.f32.gmra.mrb[0].mxu0 %v1055
  %v1057 = vpop.f32.mrb[0].mxu0
  %v1058 = vadd.f32 %v662, %v1057
  %v1059 = vpop.f32.mrb[0].mxu0
  %1060 = vmatprep.mubr.f32.mxu0 0.0
  %v1061 = vand.u32 %v738, 4294901760
  %v1062 = vsub.f32 %v738, %v1061
  %v1063 = vand.u32 %v1062, 4294901760
  %v1064 = vsub.f32 %v1062, %v1063
  %v1065 = vand.u32 %v1064, 4294901760
  %1066 = vmatmul.mubr.f32.gmra.mrb[0].mxu0 %v1065
  %v1067 = vpop.f32.mrb[0].mxu0
  %v1068 = vadd.f32 %v662, %v1067
  %v1069 = vpop.f32.mrb[0].mxu0
  %1070 = vdwg.mxu0
  %1071 = vmatprep.subr.mxu0 0.0
  %v1072 = vand.u32 %v24, 4294901760
  %v1073 = vsub.f32 %v24, %v1072
  %v1074 = vand.u32 %v1073, 4294901760
  %v1075 = vsub.f32 %v1073, %v1074
  %v1076 = vand.u32 %v1075, 4294901760
  %1077 = vmatpush1.msra.mxu0 %v1076
  %1078 = vmatprep.subr.mxu0 0.0
  %v1079 = vand.u32 %v25, 4294901760
  %v1080 = vsub.f32 %v25, %v1079
  %v1081 = vand.u32 %v1080, 4294901760
  %v1082 = vsub.f32 %v1080, %v1081
  %v1083 = vand.u32 %v1082, 4294901760
  %1084 = vmatpush1.msra.mxu0 %v1083
  %1085 = vmatprep.subr.mxu0 0.0
  %v1086 = vand.u32 %v26, 4294901760
  %v1087 = vsub.f32 %v26, %v1086
  %v1088 = vand.u32 %v1087, 4294901760
  %v1089 = vsub.f32 %v1087, %v1088
  %v1090 = vand.u32 %v1089, 4294901760
  %1091 = vmatpush1.msra.mxu0 %v1090
  %1092 = vmatprep.subr.mxu0 0.0
  %v1093 = vand.u32 %v27, 4294901760
  %v1094 = vsub.f32 %v27, %v1093
  %v1095 = vand.u32 %v1094, 4294901760
  %v1096 = vsub.f32 %v1094, %v1095
  %v1097 = vand.u32 %v1096, 4294901760
  %1098 = vmatpush1.msra.mxu0 %v1097
  %1099 = vmatprep.subr.mxu0 0.0
  %v1100 = vand.u32 %v28, 4294901760
  %v1101 = vsub.f32 %v28, %v1100
  %v1102 = vand.u32 %v1101, 4294901760
  %v1103 = vsub.f32 %v1101, %v1102
  %v1104 = vand.u32 %v1103, 4294901760
  %1105 = vmatpush1.msra.mxu0 %v1104
  %1106 = vmatprep.subr.mxu0 0.0
  %v1107 = vand.u32 %v29, 4294901760
  %v1108 = vsub.f32 %v29, %v1107
  %v1109 = vand.u32 %v1108, 4294901760
  %v1110 = vsub.f32 %v1108, %v1109
  %v1111 = vand.u32 %v1110, 4294901760
  %1112 = vmatpush1.msra.mxu0 %v1111
  %1113 = vmatprep.subr.mxu0 0.0
  %v1114 = vand.u32 %v30, 4294901760
  %v1115 = vsub.f32 %v30, %v1114
  %v1116 = vand.u32 %v1115, 4294901760
  %v1117 = vsub.f32 %v1115, %v1116
  %v1118 = vand.u32 %v1117, 4294901760
  %1119 = vmatpush1.msra.mxu0 %v1118
  %1120 = vmatprep.subr.mxu0 0.0
  %v1121 = vand.u32 %v31, 4294901760
  %v1122 = vsub.f32 %v31, %v1121
  %v1123 = vand.u32 %v1122, 4294901760
  %v1124 = vsub.f32 %v1122, %v1123
  %v1125 = vand.u32 %v1124, 4294901760
  %1126 = vmatpush1.msra.mxu0 %v1125
  %1127 = vmatprep.subr.mxu0 0.0
  %v1128 = vand.u32 %v32, 4294901760
  %v1129 = vsub.f32 %v32, %v1128
  %v1130 = vand.u32 %v1129, 4294901760
  %v1131 = vsub.f32 %v1129, %v1130
  %v1132 = vand.u32 %v1131, 4294901760
  %1133 = vmatpush1.msra.mxu0 %v1132
  %1134 = vmatprep.subr.mxu0 0.0
  %v1135 = vand.u32 %v33, 4294901760
  %v1136 = vsub.f32 %v33, %v1135
  %v1137 = vand.u32 %v1136, 4294901760
  %v1138 = vsub.f32 %v1136, %v1137
  %v1139 = vand.u32 %v1138, 4294901760
  %1140 = vmatpush1.msra.mxu0 %v1139
  %1141 = vmatprep.subr.mxu0 0.0
  %v1142 = vand.u32 %v34, 4294901760
  %v1143 = vsub.f32 %v34, %v1142
  %v1144 = vand.u32 %v1143, 4294901760
  %v1145 = vsub.f32 %v1143, %v1144
  %v1146 = vand.u32 %v1145, 4294901760
  %1147 = vmatpush1.msra.mxu0 %v1146
  %1148 = vmatprep.subr.mxu0 0.0
  %v1149 = vand.u32 %v742, 4294901760
  %v1150 = vsub.f32 %v742, %v1149
  %v1151 = vand.u32 %v1150, 4294901760
  %v1152 = vsub.f32 %v1150, %v1151
  %v1153 = vand.u32 %v1152, 4294901760
  %1154 = vmatpush1.msra.mxu0 %v1153
  %1155 = vmatprep.subr.mxu0 0.0
  %1156 = vmatpush1.msra.mxu0 0.0
  %1157 = vmatprep.subr.mxu0 0.0
  %1158 = vmatpush1.msra.mxu0 0.0
  %1159 = vmatprep.subr.mxu0 0.0
  %1160 = vmatpush1.msra.mxu0 0.0
  %1161 = vmatprep.subr.mxu0 0.0
  %1162 = vmatpush1.msra.mxu0 0.0
  %1163 = vmatprep.subr.mxu0 0.0
  %1164 = vmatpush1.msra.mxu0 0.0
  %1165 = vmatprep.subr.mxu0 0.0
  %1166 = vmatpush1.msra.mxu0 0.0
  %1167 = vmatprep.subr.mxu0 0.0
  %1168 = vmatpush1.msra.mxu0 0.0
  %1169 = vmatprep.subr.mxu0 0.0
  %1170 = vmatpush1.msra.mxu0 0.0
  %1171 = vmatprep.subr.mxu0 0.0
  %1172 = vmatpush1.msra.mxu0 0.0
  %1173 = vmatprep.subr.mxu0 0.0
  %1174 = vmatpush1.msra.mxu0 0.0
  %1175 = vmatprep.subr.mxu0 0.0
  %1176 = vmatpush1.msra.mxu0 0.0
  %1177 = vmatprep.subr.mxu0 0.0
  %1178 = vmatpush1.msra.mxu0 0.0
  %1179 = vmatprep.subr.mxu0 0.0
  %1180 = vmatpush1.msra.mxu0 0.0
  %1181 = vmatprep.subr.mxu0 0.0
  %1182 = vmatpush1.msra.mxu0 0.0
  %1183 = vmatprep.subr.mxu0 0.0
  %1184 = vmatpush1.msra.mxu0 0.0
  %1185 = vmatprep.subr.mxu0 0.0
  %1186 = vmatpush1.msra.mxu0 0.0
  %1187 = vmatprep.subr.mxu0 0.0
  %1188 = vmatpush1.msra.mxu0 0.0
  %1189 = vmatprep.subr.mxu0 0.0
  %1190 = vmatpush1.msra.mxu0 0.0
  %1191 = vmatprep.subr.mxu0 0.0
  %1192 = vmatpush1.msra.mxu0 0.0
  %1193 = vmatprep.subr.mxu0 0.0
  %1194 = vmatpush1.msra.mxu0 0.0
  %1195 = vmatprep.mubr.f32.mxu0 0.0
  %v1196 = vand.u32 %v666, 4294901760
  %1197 = vmatmul.mubr.f32.gmra.mrb[0].mxu0 %v1196
  %v1198 = vpop.f32.mrb[0].mxu0
  %v1199 = vadd.f32 %v828, %v1198
  %v1200 = vpop.f32.mrb[0].mxu0
  %1201 = vmatprep.mubr.f32.mxu0 0.0
  %v1202 = vand.u32 %v669, 4294901760
  %1203 = vmatmul.mubr.f32.gmra.mrb[0].mxu0 %v1202
  %v1204 = vpop.f32.mrb[0].mxu0
  %v1205 = vadd.f32 %v838, %v1204
  %v1206 = vpop.f32.mrb[0].mxu0
  %1207 = vmatprep.mubr.f32.mxu0 0.0
  %v1208 = vand.u32 %v672, 4294901760
  %1209 = vmatmul.mubr.f32.gmra.mrb[0].mxu0 %v1208
  %v1210 = vpop.f32.mrb[0].mxu0
  %v1211 = vadd.f32 %v848, %v1210
  %v1212 = vpop.f32.mrb[0].mxu0
  %1213 = vmatprep.mubr.f32.mxu0 0.0
  %v1214 = vand.u32 %v675, 4294901760
  %1215 = vmatmul.mubr.f32.gmra.mrb[0].mxu0 %v1214
  %v1216 = vpop.f32.mrb[0].mxu0
  %v1217 = vadd.f32 %v858, %v1216
  %v1218 = vpop.f32.mrb[0].mxu0
  %1219 = vmatprep.mubr.f32.mxu0 0.0
  %v1220 = vand.u32 %v678, 4294901760
  %1221 = vmatmul.mubr.f32.gmra.mrb[0].mxu0 %v1220
  %v1222 = vpop.f32.mrb[0].mxu0
  %v1223 = vadd.f32 %v868, %v1222
  %v1224 = vpop.f32.mrb[0].mxu0
  %1225 = vmatprep.mubr.f32.mxu0 0.0
  %v1226 = vand.u32 %v681, 4294901760
  %1227 = vmatmul.mubr.f32.gmra.mrb[0].mxu0 %v1226
  %v1228 = vpop.f32.mrb[0].mxu0
  %v1229 = vadd.f32 %v878, %v1228
  %v1230 = vpop.f32.mrb[0].mxu0
  %1231 = vmatprep.mubr.f32.mxu0 0.0
  %v1232 = vand.u32 %v684, 4294901760
  %1233 = vmatmul.mubr.f32.gmra.mrb[0].mxu0 %v1232
  %v1234 = vpop.f32.mrb[0].mxu0
  %v1235 = vadd.f32 %v888, %v1234
  %v1236 = vpop.f32.mrb[0].mxu0
  %1237 = vmatprep.mubr.f32.mxu0 0.0
  %v1238 = vand.u32 %v687, 4294901760
  %1239 = vmatmul.mubr.f32.gmra.mrb[0].mxu0 %v1238
  %v1240 = vpop.f32.mrb[0].mxu0
  %v1241 = vadd.f32 %v898, %v1240
  %v1242 = vpop.f32.mrb[0].mxu0
  %1243 = vmatprep.mubr.f32.mxu0 0.0
  %v1244 = vand.u32 %v690, 4294901760
  %1245 = vmatmul.mubr.f32.gmra.mrb[0].mxu0 %v1244
  %v1246 = vpop.f32.mrb[0].mxu0
  %v1247 = vadd.f32 %v908, %v1246
  %v1248 = vpop.f32.mrb[0].mxu0
  %1249 = vmatprep.mubr.f32.mxu0 0.0
  %v1250 = vand.u32 %v693, 4294901760
  %1251 = vmatmul.mubr.f32.gmra.mrb[0].mxu0 %v1250
  %v1252 = vpop.f32.mrb[0].mxu0
  %v1253 = vadd.f32 %v918, %v1252
  %v1254 = vpop.f32.mrb[0].mxu0
  %1255 = vmatprep.mubr.f32.mxu0 0.0
  %v1256 = vand.u32 %v696, 4294901760
  %1257 = vmatmul.mubr.f32.gmra.mrb[0].mxu0 %v1256
  %v1258 = vpop.f32.mrb[0].mxu0
  %v1259 = vadd.f32 %v928, %v1258
  %v1260 = vpop.f32.mrb[0].mxu0
  %1261 = vmatprep.mubr.f32.mxu0 0.0
  %v1262 = vand.u32 %v699, 4294901760
  %1263 = vmatmul.mubr.f32.gmra.mrb[0].mxu0 %v1262
  %v1264 = vpop.f32.mrb[0].mxu0
  %v1265 = vadd.f32 %v938, %v1264
  %v1266 = vpop.f32.mrb[0].mxu0
  %1267 = vmatprep.mubr.f32.mxu0 0.0
  %v1268 = vand.u32 %v702, 4294901760
  %1269 = vmatmul.mubr.f32.gmra.mrb[0].mxu0 %v1268
  %v1270 = vpop.f32.mrb[0].mxu0
  %v1271 = vadd.f32 %v948, %v1270
  %v1272 = vpop.f32.mrb[0].mxu0
  %1273 = vmatprep.mubr.f32.mxu0 0.0
  %v1274 = vand.u32 %v705, 4294901760
  %1275 = vmatmul.mubr.f32.gmra.mrb[0].mxu0 %v1274
  %v1276 = vpop.f32.mrb[0].mxu0
  %v1277 = vadd.f32 %v958, %v1276
  %v1278 = vpop.f32.mrb[0].mxu0
  %1279 = vmatprep.mubr.f32.mxu0 0.0
  %v1280 = vand.u32 %v708, 4294901760
  %1281 = vmatmul.mubr.f32.gmra.mrb[0].mxu0 %v1280
  %v1282 = vpop.f32.mrb[0].mxu0
  %v1283 = vadd.f32 %v968, %v1282
  %v1284 = vpop.f32.mrb[0].mxu0
  %1285 = vmatprep.mubr.f32.mxu0 0.0
  %v1286 = vand.u32 %v711, 4294901760
  %1287 = vmatmul.mubr.f32.gmra.mrb[0].mxu0 %v1286
  %v1288 = vpop.f32.mrb[0].mxu0
  %v1289 = vadd.f32 %v978, %v1288
  %v1290 = vpop.f32.mrb[0].mxu0
  %1291 = vmatprep.mubr.f32.mxu0 0.0
  %v1292 = vand.u32 %v714, 4294901760
  %1293 = vmatmul.mubr.f32.gmra.mrb[0].mxu0 %v1292
  %v1294 = vpop.f32.mrb[0].mxu0
  %v1295 = vadd.f32 %v988, %v1294
  %v1296 = vpop.f32.mrb[0].mxu0
  %1297 = vmatprep.mubr.f32.mxu0 0.0
  %v1298 = vand.u32 %v717, 4294901760
  %1299 = vmatmul.mubr.f32.gmra.mrb[0].mxu0 %v1298
  %v1300 = vpop.f32.mrb[0].mxu0
  %v1301 = vadd.f32 %v998, %v1300
  %v1302 = vpop.f32.mrb[0].mxu0
  %1303 = vmatprep.mubr.f32.mxu0 0.0
  %v1304 = vand.u32 %v720, 4294901760
  %1305 = vmatmul.mubr.f32.gmra.mrb[0].mxu0 %v1304
  %v1306 = vpop.f32.mrb[0].mxu0
  %v1307 = vadd.f32 %v1008, %v1306
  %v1308 = vpop.f32.mrb[0].mxu0
  %1309 = vmatprep.mubr.f32.mxu0 0.0
  %v1310 = vand.u32 %v723, 4294901760
  %1311 = vmatmul.mubr.f32.gmra.mrb[0].mxu0 %v1310
  %v1312 = vpop.f32.mrb[0].mxu0
  %v1313 = vadd.f32 %v1018, %v1312
  %v1314 = vpop.f32.mrb[0].mxu0
  %1315 = vmatprep.mubr.f32.mxu0 0.0
  %v1316 = vand.u32 %v726, 4294901760
  %1317 = vmatmul.mubr.f32.gmra.mrb[0].mxu0 %v1316
  %v1318 = vpop.f32.mrb[0].mxu0
  %v1319 = vadd.f32 %v1028, %v1318
  %v1320 = vpop.f32.mrb[0].mxu0
  %1321 = vmatprep.mubr.f32.mxu0 0.0
  %v1322 = vand.u32 %v729, 4294901760
  %1323 = vmatmul.mubr.f32.gmra.mrb[0].mxu0 %v1322
  %v1324 = vpop.f32.mrb[0].mxu0
  %v1325 = vadd.f32 %v1038, %v1324
  %v1326 = vpop.f32.mrb[0].mxu0
  %1327 = vmatprep.mubr.f32.mxu0 0.0
  %v1328 = vand.u32 %v732, 4294901760
  %1329 = vmatmul.mubr.f32.gmra.mrb[0].mxu0 %v1328
  %v1330 = vpop.f32.mrb[0].mxu0
  %v1331 = vadd.f32 %v1048, %v1330
  %v1332 = vpop.f32.mrb[0].mxu0
  %1333 = vmatprep.mubr.f32.mxu0 0.0
  %v1334 = vand.u32 %v735, 4294901760
  %1335 = vmatmul.mubr.f32.gmra.mrb[0].mxu0 %v1334
  %v1336 = vpop.f32.mrb[0].mxu0
  %v1337 = vadd.f32 %v1058, %v1336
  %v1338 = vpop.f32.mrb[0].mxu0
  %1339 = vmatprep.mubr.f32.mxu0 0.0
  %v1340 = vand.u32 %v738, 4294901760
  %1341 = vmatmul.mubr.f32.gmra.mrb[0].mxu0 %v1340
  %v1342 = vpop.f32.mrb[0].mxu0
  %v1343 = vadd.f32 %v1068, %v1342
  %v1344 = vpop.f32.mrb[0].mxu0
  %1345 = vdwg.mxu0
  %1346 = vmatprep.subr.mxu0 0.0
  %v1347 = vand.u32 %v24, 4294901760
  %v1348 = vsub.f32 %v24, %v1347
  %1349 = vmatpush1.msra.mxu0 %v1348
  %1350 = vmatprep.subr.mxu0 0.0
  %v1351 = vand.u32 %v25, 4294901760
  %v1352 = vsub.f32 %v25, %v1351
  %1353 = vmatpush1.msra.mxu0 %v1352
  %1354 = vmatprep.subr.mxu0 0.0
  %v1355 = vand.u32 %v26, 4294901760
  %v1356 = vsub.f32 %v26, %v1355
  %1357 = vmatpush1.msra.mxu0 %v1356
  %1358 = vmatprep.subr.mxu0 0.0
  %v1359 = vand.u32 %v27, 4294901760
  %v1360 = vsub.f32 %v27, %v1359
  %1361 = vmatpush1.msra.mxu0 %v1360
  %1362 = vmatprep.subr.mxu0 0.0
  %v1363 = vand.u32 %v28, 4294901760
  %v1364 = vsub.f32 %v28, %v1363
  %1365 = vmatpush1.msra.mxu0 %v1364
  %1366 = vmatprep.subr.mxu0 0.0
  %v1367 = vand.u32 %v29, 4294901760
  %v1368 = vsub.f32 %v29, %v1367
  %1369 = vmatpush1.msra.mxu0 %v1368
  %1370 = vmatprep.subr.mxu0 0.0
  %v1371 = vand.u32 %v30, 4294901760
  %v1372 = vsub.f32 %v30, %v1371
  %1373 = vmatpush1.msra.mxu0 %v1372
  %1374 = vmatprep.subr.mxu0 0.0
  %v1375 = vand.u32 %v31, 4294901760
  %v1376 = vsub.f32 %v31, %v1375
  %1377 = vmatpush1.msra.mxu0 %v1376
  %1378 = vmatprep.subr.mxu0 0.0
  %v1379 = vand.u32 %v32, 4294901760
  %v1380 = vsub.f32 %v32, %v1379
  %1381 = vmatpush1.msra.mxu0 %v1380
  %1382 = vmatprep.subr.mxu0 0.0
  %v1383 = vand.u32 %v33, 4294901760
  %v1384 = vsub.f32 %v33, %v1383
  %1385 = vmatpush1.msra.mxu0 %v1384
  %1386 = vmatprep.subr.mxu0 0.0
  %v1387 = vand.u32 %v34, 4294901760
  %v1388 = vsub.f32 %v34, %v1387
  %1389 = vmatpush1.msra.mxu0 %v1388
  %1390 = vmatprep.subr.mxu0 0.0
  %v1391 = vand.u32 %v742, 4294901760
  %v1392 = vsub.f32 %v742, %v1391
  %1393 = vmatpush1.msra.mxu0 %v1392
  %1394 = vmatprep.subr.mxu0 0.0
  %1395 = vmatpush1.msra.mxu0 0.0
  %1396 = vmatprep.subr.mxu0 0.0
  %1397 = vmatpush1.msra.mxu0 0.0
  %1398 = vmatprep.subr.mxu0 0.0
  %1399 = vmatpush1.msra.mxu0 0.0
  %1400 = vmatprep.subr.mxu0 0.0
  %1401 = vmatpush1.msra.mxu0 0.0
  %1402 = vmatprep.subr.mxu0 0.0
  %1403 = vmatpush1.msra.mxu0 0.0
  %1404 = vmatprep.subr.mxu0 0.0
  %1405 = vmatpush1.msra.mxu0 0.0
  %1406 = vmatprep.subr.mxu0 0.0
  %1407 = vmatpush1.msra.mxu0 0.0
  %1408 = vmatprep.subr.mxu0 0.0
  %1409 = vmatpush1.msra.mxu0 0.0
  %1410 = vmatprep.subr.mxu0 0.0
  %1411 = vmatpush1.msra.mxu0 0.0
  %1412 = vmatprep.subr.mxu0 0.0
  %1413 = vmatpush1.msra.mxu0 0.0
  %1414 = vmatprep.subr.mxu0 0.0
  %1415 = vmatpush1.msra.mxu0 0.0
  %1416 = vmatprep.subr.mxu0 0.0
  %1417 = vmatpush1.msra.mxu0 0.0
  %1418 = vmatprep.subr.mxu0 0.0
  %1419 = vmatpush1.msra.mxu0 0.0
  %1420 = vmatprep.subr.mxu0 0.0
  %1421 = vmatpush1.msra.mxu0 0.0
  %1422 = vmatprep.subr.mxu0 0.0
  %1423 = vmatpush1.msra.mxu0 0.0
  %1424 = vmatprep.subr.mxu0 0.0
  %1425 = vmatpush1.msra.mxu0 0.0
  %1426 = vmatprep.subr.mxu0 0.0
  %1427 = vmatpush1.msra.mxu0 0.0
  %1428 = vmatprep.subr.mxu0 0.0
  %1429 = vmatpush1.msra.mxu0 0.0
  %1430 = vmatprep.subr.mxu0 0.0
  %1431 = vmatpush1.msra.mxu0 0.0
  %1432 = vmatprep.subr.mxu0 0.0
  %1433 = vmatpush1.msra.mxu0 0.0
  %1434 = vmatprep.mubr.f32.mxu0 0.0
  %v1435 = vand.u32 %v666, 4294901760
  %v1436 = vsub.f32 %v666, %v1435
  %1437 = vmatmul.mubr.f32.gmra.mrb[0].mxu0 %v1436
  %v1438 = vpop.f32.mrb[0].mxu0
  %v1439 = vadd.f32 %v1199, %v1438
  %v1440 = vpop.f32.mrb[0].mxu0
  %1441 = vmatprep.mubr.f32.mxu0 0.0
  %v1442 = vand.u32 %v669, 4294901760
  %v1443 = vsub.f32 %v669, %v1442
  %1444 = vmatmul.mubr.f32.gmra.mrb[0].mxu0 %v1443
  %v1445 = vpop.f32.mrb[0].mxu0
  %v1446 = vadd.f32 %v1205, %v1445
  %v1447 = vpop.f32.mrb[0].mxu0
  %1448 = vmatprep.mubr.f32.mxu0 0.0
  %v1449 = vand.u32 %v672, 4294901760
  %v1450 = vsub.f32 %v672, %v1449
  %1451 = vmatmul.mubr.f32.gmra.mrb[0].mxu0 %v1450
  %v1452 = vpop.f32.mrb[0].mxu0
  %v1453 = vadd.f32 %v1211, %v1452
  %v1454 = vpop.f32.mrb[0].mxu0
  %1455 = vmatprep.mubr.f32.mxu0 0.0
  %v1456 = vand.u32 %v675, 4294901760
  %v1457 = vsub.f32 %v675, %v1456
  %1458 = vmatmul.mubr.f32.gmra.mrb[0].mxu0 %v1457
  %v1459 = vpop.f32.mrb[0].mxu0
  %v1460 = vadd.f32 %v1217, %v1459
  %v1461 = vpop.f32.mrb[0].mxu0
  %1462 = vmatprep.mubr.f32.mxu0 0.0
  %v1463 = vand.u32 %v678, 4294901760
  %v1464 = vsub.f32 %v678, %v1463
  %1465 = vmatmul.mubr.f32.gmra.mrb[0].mxu0 %v1464
  %v1466 = vpop.f32.mrb[0].mxu0
  %v1467 = vadd.f32 %v1223, %v1466
  %v1468 = vpop.f32.mrb[0].mxu0
  %1469 = vmatprep.mubr.f32.mxu0 0.0
  %v1470 = vand.u32 %v681, 4294901760
  %v1471 = vsub.f32 %v681, %v1470
  %1472 = vmatmul.mubr.f32.gmra.mrb[0].mxu0 %v1471
  %v1473 = vpop.f32.mrb[0].mxu0
  %v1474 = vadd.f32 %v1229, %v1473
  %v1475 = vpop.f32.mrb[0].mxu0
  %1476 = vmatprep.mubr.f32.mxu0 0.0
  %v1477 = vand.u32 %v684, 4294901760
  %v1478 = vsub.f32 %v684, %v1477
  %1479 = vmatmul.mubr.f32.gmra.mrb[0].mxu0 %v1478
  %v1480 = vpop.f32.mrb[0].mxu0
  %v1481 = vadd.f32 %v1235, %v1480
  %v1482 = vpop.f32.mrb[0].mxu0
  %1483 = vmatprep.mubr.f32.mxu0 0.0
  %v1484 = vand.u32 %v687, 4294901760
  %v1485 = vsub.f32 %v687, %v1484
  %1486 = vmatmul.mubr.f32.gmra.mrb[0].mxu0 %v1485
  %v1487 = vpop.f32.mrb[0].mxu0
  %v1488 = vadd.f32 %v1241, %v1487
  %v1489 = vpop.f32.mrb[0].mxu0
  %1490 = vmatprep.mubr.f32.mxu0 0.0
  %v1491 = vand.u32 %v690, 4294901760
  %v1492 = vsub.f32 %v690, %v1491
  %1493 = vmatmul.mubr.f32.gmra.mrb[0].mxu0 %v1492
  %v1494 = vpop.f32.mrb[0].mxu0
  %v1495 = vadd.f32 %v1247, %v1494
  %v1496 = vpop.f32.mrb[0].mxu0
  %1497 = vmatprep.mubr.f32.mxu0 0.0
  %v1498 = vand.u32 %v693, 4294901760
  %v1499 = vsub.f32 %v693, %v1498
  %1500 = vmatmul.mubr.f32.gmra.mrb[0].mxu0 %v1499
  %v1501 = vpop.f32.mrb[0].mxu0
  %v1502 = vadd.f32 %v1253, %v1501
  %v1503 = vpop.f32.mrb[0].mxu0
  %1504 = vmatprep.mubr.f32.mxu0 0.0
  %v1505 = vand.u32 %v696, 4294901760
  %v1506 = vsub.f32 %v696, %v1505
  %1507 = vmatmul.mubr.f32.gmra.mrb[0].mxu0 %v1506
  %v1508 = vpop.f32.mrb[0].mxu0
  %v1509 = vadd.f32 %v1259, %v1508
  %v1510 = vpop.f32.mrb[0].mxu0
  %1511 = vmatprep.mubr.f32.mxu0 0.0
  %v1512 = vand.u32 %v699, 4294901760
  %v1513 = vsub.f32 %v699, %v1512
  %1514 = vmatmul.mubr.f32.gmra.mrb[0].mxu0 %v1513
  %v1515 = vpop.f32.mrb[0].mxu0
  %v1516 = vadd.f32 %v1265, %v1515
  %v1517 = vpop.f32.mrb[0].mxu0
  %1518 = vmatprep.mubr.f32.mxu0 0.0
  %v1519 = vand.u32 %v702, 4294901760
  %v1520 = vsub.f32 %v702, %v1519
  %1521 = vmatmul.mubr.f32.gmra.mrb[0].mxu0 %v1520
  %v1522 = vpop.f32.mrb[0].mxu0
  %v1523 = vadd.f32 %v1271, %v1522
  %v1524 = vpop.f32.mrb[0].mxu0
  %1525 = vmatprep.mubr.f32.mxu0 0.0
  %v1526 = vand.u32 %v705, 4294901760
  %v1527 = vsub.f32 %v705, %v1526
  %1528 = vmatmul.mubr.f32.gmra.mrb[0].mxu0 %v1527
  %v1529 = vpop.f32.mrb[0].mxu0
  %v1530 = vadd.f32 %v1277, %v1529
  %v1531 = vpop.f32.mrb[0].mxu0
  %1532 = vmatprep.mubr.f32.mxu0 0.0
  %v1533 = vand.u32 %v708, 4294901760
  %v1534 = vsub.f32 %v708, %v1533
  %1535 = vmatmul.mubr.f32.gmra.mrb[0].mxu0 %v1534
  %v1536 = vpop.f32.mrb[0].mxu0
  %v1537 = vadd.f32 %v1283, %v1536
  %v1538 = vpop.f32.mrb[0].mxu0
  %1539 = vmatprep.mubr.f32.mxu0 0.0
  %v1540 = vand.u32 %v711, 4294901760
  %v1541 = vsub.f32 %v711, %v1540
  %1542 = vmatmul.mubr.f32.gmra.mrb[0].mxu0 %v1541
  %v1543 = vpop.f32.mrb[0].mxu0
  %v1544 = vadd.f32 %v1289, %v1543
  %v1545 = vpop.f32.mrb[0].mxu0
  %1546 = vmatprep.mubr.f32.mxu0 0.0
  %v1547 = vand.u32 %v714, 4294901760
  %v1548 = vsub.f32 %v714, %v1547
  %1549 = vmatmul.mubr.f32.gmra.mrb[0].mxu0 %v1548
  %v1550 = vpop.f32.mrb[0].mxu0
  %v1551 = vadd.f32 %v1295, %v1550
  %v1552 = vpop.f32.mrb[0].mxu0
  %1553 = vmatprep.mubr.f32.mxu0 0.0
  %v1554 = vand.u32 %v717, 4294901760
  %v1555 = vsub.f32 %v717, %v1554
  %1556 = vmatmul.mubr.f32.gmra.mrb[0].mxu0 %v1555
  %v1557 = vpop.f32.mrb[0].mxu0
  %v1558 = vadd.f32 %v1301, %v1557
  %v1559 = vpop.f32.mrb[0].mxu0
  %1560 = vmatprep.mubr.f32.mxu0 0.0
  %v1561 = vand.u32 %v720, 4294901760
  %v1562 = vsub.f32 %v720, %v1561
  %1563 = vmatmul.mubr.f32.gmra.mrb[0].mxu0 %v1562
  %v1564 = vpop.f32.mrb[0].mxu0
  %v1565 = vadd.f32 %v1307, %v1564
  %v1566 = vpop.f32.mrb[0].mxu0
  %1567 = vmatprep.mubr.f32.mxu0 0.0
  %v1568 = vand.u32 %v723, 4294901760
  %v1569 = vsub.f32 %v723, %v1568
  %1570 = vmatmul.mubr.f32.gmra.mrb[0].mxu0 %v1569
  %v1571 = vpop.f32.mrb[0].mxu0
  %v1572 = vadd.f32 %v1313, %v1571
  %v1573 = vpop.f32.mrb[0].mxu0
  %1574 = vmatprep.mubr.f32.mxu0 0.0
  %v1575 = vand.u32 %v726, 4294901760
  %v1576 = vsub.f32 %v726, %v1575
  %1577 = vmatmul.mubr.f32.gmra.mrb[0].mxu0 %v1576
  %v1578 = vpop.f32.mrb[0].mxu0
  %v1579 = vadd.f32 %v1319, %v1578
  %v1580 = vpop.f32.mrb[0].mxu0
  %1581 = vmatprep.mubr.f32.mxu0 0.0
  %v1582 = vand.u32 %v729, 4294901760
  %v1583 = vsub.f32 %v729, %v1582
  %1584 = vmatmul.mubr.f32.gmra.mrb[0].mxu0 %v1583
  %v1585 = vpop.f32.mrb[0].mxu0
  %v1586 = vadd.f32 %v1325, %v1585
  %v1587 = vpop.f32.mrb[0].mxu0
  %1588 = vmatprep.mubr.f32.mxu0 0.0
  %v1589 = vand.u32 %v732, 4294901760
  %v1590 = vsub.f32 %v732, %v1589
  %1591 = vmatmul.mubr.f32.gmra.mrb[0].mxu0 %v1590
  %v1592 = vpop.f32.mrb[0].mxu0
  %v1593 = vadd.f32 %v1331, %v1592
  %v1594 = vpop.f32.mrb[0].mxu0
  %1595 = vmatprep.mubr.f32.mxu0 0.0
  %v1596 = vand.u32 %v735, 4294901760
  %v1597 = vsub.f32 %v735, %v1596
  %1598 = vmatmul.mubr.f32.gmra.mrb[0].mxu0 %v1597
  %v1599 = vpop.f32.mrb[0].mxu0
  %v1600 = vadd.f32 %v1337, %v1599
  %v1601 = vpop.f32.mrb[0].mxu0
  %1602 = vmatprep.mubr.f32.mxu0 0.0
  %v1603 = vand.u32 %v738, 4294901760
  %v1604 = vsub.f32 %v738, %v1603
  %1605 = vmatmul.mubr.f32.gmra.mrb[0].mxu0 %v1604
  %v1606 = vpop.f32.mrb[0].mxu0
  %v1607 = vadd.f32 %v1343, %v1606
  %v1608 = vpop.f32.mrb[0].mxu0
  %1609 = vdwg.mxu0
  %1610 = vmatprep.subr.mxu0 0.0
  %v1611 = vand.u32 %v24, 4294901760
  %1612 = vmatpush1.msra.mxu0 %v1611
  %1613 = vmatprep.subr.mxu0 0.0
  %v1614 = vand.u32 %v25, 4294901760
  %1615 = vmatpush1.msra.mxu0 %v1614
  %1616 = vmatprep.subr.mxu0 0.0
  %v1617 = vand.u32 %v26, 4294901760
  %1618 = vmatpush1.msra.mxu0 %v1617
  %1619 = vmatprep.subr.mxu0 0.0
  %v1620 = vand.u32 %v27, 4294901760
  %1621 = vmatpush1.msra.mxu0 %v1620
  %1622 = vmatprep.subr.mxu0 0.0
  %v1623 = vand.u32 %v28, 4294901760
  %1624 = vmatpush1.msra.mxu0 %v1623
  %1625 = vmatprep.subr.mxu0 0.0
  %v1626 = vand.u32 %v29, 4294901760
  %1627 = vmatpush1.msra.mxu0 %v1626
  %1628 = vmatprep.subr.mxu0 0.0
  %v1629 = vand.u32 %v30, 4294901760
  %1630 = vmatpush1.msra.mxu0 %v1629
  %1631 = vmatprep.subr.mxu0 0.0
  %v1632 = vand.u32 %v31, 4294901760
  %1633 = vmatpush1.msra.mxu0 %v1632
  %1634 = vmatprep.subr.mxu0 0.0
  %v1635 = vand.u32 %v32, 4294901760
  %1636 = vmatpush1.msra.mxu0 %v1635
  %1637 = vmatprep.subr.mxu0 0.0
  %v1638 = vand.u32 %v33, 4294901760
  %1639 = vmatpush1.msra.mxu0 %v1638
  %1640 = vmatprep.subr.mxu0 0.0
  %v1641 = vand.u32 %v34, 4294901760
  %1642 = vmatpush1.msra.mxu0 %v1641
  %1643 = vmatprep.subr.mxu0 0.0
  %v1644 = vand.u32 %v742, 4294901760
  %1645 = vmatpush1.msra.mxu0 %v1644
  %1646 = vmatprep.subr.mxu0 0.0
  %1647 = vmatpush1.msra.mxu0 0.0
  %1648 = vmatprep.subr.mxu0 0.0
  %1649 = vmatpush1.msra.mxu0 0.0
  %1650 = vmatprep.subr.mxu0 0.0
  %1651 = vmatpush1.msra.mxu0 0.0
  %1652 = vmatprep.subr.mxu0 0.0
  %1653 = vmatpush1.msra.mxu0 0.0
  %1654 = vmatprep.subr.mxu0 0.0
  %1655 = vmatpush1.msra.mxu0 0.0
  %1656 = vmatprep.subr.mxu0 0.0
  %1657 = vmatpush1.msra.mxu0 0.0
  %1658 = vmatprep.subr.mxu0 0.0
  %1659 = vmatpush1.msra.mxu0 0.0
  %1660 = vmatprep.subr.mxu0 0.0
  %1661 = vmatpush1.msra.mxu0 0.0
  %1662 = vmatprep.subr.mxu0 0.0
  %1663 = vmatpush1.msra.mxu0 0.0
  %1664 = vmatprep.subr.mxu0 0.0
  %1665 = vmatpush1.msra.mxu0 0.0
  %1666 = vmatprep.subr.mxu0 0.0
  %1667 = vmatpush1.msra.mxu0 0.0
  %1668 = vmatprep.subr.mxu0 0.0
  %1669 = vmatpush1.msra.mxu0 0.0
  %1670 = vmatprep.subr.mxu0 0.0
  %1671 = vmatpush1.msra.mxu0 0.0
  %1672 = vmatprep.subr.mxu0 0.0
  %1673 = vmatpush1.msra.mxu0 0.0
  %1674 = vmatprep.subr.mxu0 0.0
  %1675 = vmatpush1.msra.mxu0 0.0
  %1676 = vmatprep.subr.mxu0 0.0
  %1677 = vmatpush1.msra.mxu0 0.0
  %1678 = vmatprep.subr.mxu0 0.0
  %1679 = vmatpush1.msra.mxu0 0.0
  %1680 = vmatprep.subr.mxu0 0.0
  %1681 = vmatpush1.msra.mxu0 0.0
  %1682 = vmatprep.subr.mxu0 0.0
  %1683 = vmatpush1.msra.mxu0 0.0
  %1684 = vmatprep.subr.mxu0 0.0
  %1685 = vmatpush1.msra.mxu0 0.0
  %1686 = vmatprep.mubr.f32.mxu0 0.0
  %v1687 = vand.u32 %v666, 4294901760
  %v1688 = vsub.f32 %v666, %v1687
  %v1689 = vand.u32 %v1688, 4294901760
  %1690 = vmatmul.mubr.f32.gmra.mrb[0].mxu0 %v1689
  %v1691 = vpop.f32.mrb[0].mxu0
  %v1692 = vadd.f32 %v1439, %v1691
  %v1693 = vpop.f32.mrb[0].mxu0
  %1694 = vmatprep.mubr.f32.mxu0 0.0
  %v1695 = vand.u32 %v669, 4294901760
  %v1696 = vsub.f32 %v669, %v1695
  %v1697 = vand.u32 %v1696, 4294901760
  %1698 = vmatmul.mubr.f32.gmra.mrb[0].mxu0 %v1697
  %v1699 = vpop.f32.mrb[0].mxu0
  %v1700 = vadd.f32 %v1446, %v1699
  %v1701 = vpop.f32.mrb[0].mxu0
  %1702 = vmatprep.mubr.f32.mxu0 0.0
  %v1703 = vand.u32 %v672, 4294901760
  %v1704 = vsub.f32 %v672, %v1703
  %v1705 = vand.u32 %v1704, 4294901760
  %1706 = vmatmul.mubr.f32.gmra.mrb[0].mxu0 %v1705
  %v1707 = vpop.f32.mrb[0].mxu0
  %v1708 = vadd.f32 %v1453, %v1707
  %v1709 = vpop.f32.mrb[0].mxu0
  %1710 = vmatprep.mubr.f32.mxu0 0.0
  %v1711 = vand.u32 %v675, 4294901760
  %v1712 = vsub.f32 %v675, %v1711
  %v1713 = vand.u32 %v1712, 4294901760
  %1714 = vmatmul.mubr.f32.gmra.mrb[0].mxu0 %v1713
  %v1715 = vpop.f32.mrb[0].mxu0
  %v1716 = vadd.f32 %v1460, %v1715
  %v1717 = vpop.f32.mrb[0].mxu0
  %1718 = vmatprep.mubr.f32.mxu0 0.0
  %v1719 = vand.u32 %v678, 4294901760
  %v1720 = vsub.f32 %v678, %v1719
  %v1721 = vand.u32 %v1720, 4294901760
  %1722 = vmatmul.mubr.f32.gmra.mrb[0].mxu0 %v1721
  %v1723 = vpop.f32.mrb[0].mxu0
  %v1724 = vadd.f32 %v1467, %v1723
  %v1725 = vpop.f32.mrb[0].mxu0
  %1726 = vmatprep.mubr.f32.mxu0 0.0
  %v1727 = vand.u32 %v681, 4294901760
  %v1728 = vsub.f32 %v681, %v1727
  %v1729 = vand.u32 %v1728, 4294901760
  %1730 = vmatmul.mubr.f32.gmra.mrb[0].mxu0 %v1729
  %v1731 = vpop.f32.mrb[0].mxu0
  %v1732 = vadd.f32 %v1474, %v1731
  %v1733 = vpop.f32.mrb[0].mxu0
  %1734 = vmatprep.mubr.f32.mxu0 0.0
  %v1735 = vand.u32 %v684, 4294901760
  %v1736 = vsub.f32 %v684, %v1735
  %v1737 = vand.u32 %v1736, 4294901760
  %1738 = vmatmul.mubr.f32.gmra.mrb[0].mxu0 %v1737
  %v1739 = vpop.f32.mrb[0].mxu0
  %v1740 = vadd.f32 %v1481, %v1739
  %v1741 = vpop.f32.mrb[0].mxu0
  %1742 = vmatprep.mubr.f32.mxu0 0.0
  %v1743 = vand.u32 %v687, 4294901760
  %v1744 = vsub.f32 %v687, %v1743
  %v1745 = vand.u32 %v1744, 4294901760
  %1746 = vmatmul.mubr.f32.gmra.mrb[0].mxu0 %v1745
  %v1747 = vpop.f32.mrb[0].mxu0
  %v1748 = vadd.f32 %v1488, %v1747
  %v1749 = vpop.f32.mrb[0].mxu0
  %1750 = vmatprep.mubr.f32.mxu0 0.0
  %v1751 = vand.u32 %v690, 4294901760
  %v1752 = vsub.f32 %v690, %v1751
  %v1753 = vand.u32 %v1752, 4294901760
  %1754 = vmatmul.mubr.f32.gmra.mrb[0].mxu0 %v1753
  %v1755 = vpop.f32.mrb[0].mxu0
  %v1756 = vadd.f32 %v1495, %v1755
  %v1757 = vpop.f32.mrb[0].mxu0
  %1758 = vmatprep.mubr.f32.mxu0 0.0
  %v1759 = vand.u32 %v693, 4294901760
  %v1760 = vsub.f32 %v693, %v1759
  %v1761 = vand.u32 %v1760, 4294901760
  %1762 = vmatmul.mubr.f32.gmra.mrb[0].mxu0 %v1761
  %v1763 = vpop.f32.mrb[0].mxu0
  %v1764 = vadd.f32 %v1502, %v1763
  %v1765 = vpop.f32.mrb[0].mxu0
  %1766 = vmatprep.mubr.f32.mxu0 0.0
  %v1767 = vand.u32 %v696, 4294901760
  %v1768 = vsub.f32 %v696, %v1767
  %v1769 = vand.u32 %v1768, 4294901760
  %1770 = vmatmul.mubr.f32.gmra.mrb[0].mxu0 %v1769
  %v1771 = vpop.f32.mrb[0].mxu0
  %v1772 = vadd.f32 %v1509, %v1771
  %v1773 = vpop.f32.mrb[0].mxu0
  %1774 = vmatprep.mubr.f32.mxu0 0.0
  %v1775 = vand.u32 %v699, 4294901760
  %v1776 = vsub.f32 %v699, %v1775
  %v1777 = vand.u32 %v1776, 4294901760
  %1778 = vmatmul.mubr.f32.gmra.mrb[0].mxu0 %v1777
  %v1779 = vpop.f32.mrb[0].mxu0
  %v1780 = vadd.f32 %v1516, %v1779
  %v1781 = vpop.f32.mrb[0].mxu0
  %1782 = vmatprep.mubr.f32.mxu0 0.0
  %v1783 = vand.u32 %v702, 4294901760
  %v1784 = vsub.f32 %v702, %v1783
  %v1785 = vand.u32 %v1784, 4294901760
  %1786 = vmatmul.mubr.f32.gmra.mrb[0].mxu0 %v1785
  %v1787 = vpop.f32.mrb[0].mxu0
  %v1788 = vadd.f32 %v1523, %v1787
  %v1789 = vpop.f32.mrb[0].mxu0
  %1790 = vmatprep.mubr.f32.mxu0 0.0
  %v1791 = vand.u32 %v705, 4294901760
  %v1792 = vsub.f32 %v705, %v1791
  %v1793 = vand.u32 %v1792, 4294901760
  %1794 = vmatmul.mubr.f32.gmra.mrb[0].mxu0 %v1793
  %v1795 = vpop.f32.mrb[0].mxu0
  %v1796 = vadd.f32 %v1530, %v1795
  %v1797 = vpop.f32.mrb[0].mxu0
  %1798 = vmatprep.mubr.f32.mxu0 0.0
  %v1799 = vand.u32 %v708, 4294901760
  %v1800 = vsub.f32 %v708, %v1799
  %v1801 = vand.u32 %v1800, 4294901760
  %1802 = vmatmul.mubr.f32.gmra.mrb[0].mxu0 %v1801
  %v1803 = vpop.f32.mrb[0].mxu0
  %v1804 = vadd.f32 %v1537, %v1803
  %v1805 = vpop.f32.mrb[0].mxu0
  %1806 = vmatprep.mubr.f32.mxu0 0.0
  %v1807 = vand.u32 %v711, 4294901760
  %v1808 = vsub.f32 %v711, %v1807
  %v1809 = vand.u32 %v1808, 4294901760
  %1810 = vmatmul.mubr.f32.gmra.mrb[0].mxu0 %v1809
  %v1811 = vpop.f32.mrb[0].mxu0
  %v1812 = vadd.f32 %v1544, %v1811
  %v1813 = vpop.f32.mrb[0].mxu0
  %1814 = vmatprep.mubr.f32.mxu0 0.0
  %v1815 = vand.u32 %v714, 4294901760
  %v1816 = vsub.f32 %v714, %v1815
  %v1817 = vand.u32 %v1816, 4294901760
  %1818 = vmatmul.mubr.f32.gmra.mrb[0].mxu0 %v1817
  %v1819 = vpop.f32.mrb[0].mxu0
  %v1820 = vadd.f32 %v1551, %v1819
  %v1821 = vpop.f32.mrb[0].mxu0
  %1822 = vmatprep.mubr.f32.mxu0 0.0
  %v1823 = vand.u32 %v717, 4294901760
  %v1824 = vsub.f32 %v717, %v1823
  %v1825 = vand.u32 %v1824, 4294901760
  %1826 = vmatmul.mubr.f32.gmra.mrb[0].mxu0 %v1825
  %v1827 = vpop.f32.mrb[0].mxu0
  %v1828 = vadd.f32 %v1558, %v1827
  %v1829 = vpop.f32.mrb[0].mxu0
  %1830 = vmatprep.mubr.f32.mxu0 0.0
  %v1831 = vand.u32 %v720, 4294901760
  %v1832 = vsub.f32 %v720, %v1831
  %v1833 = vand.u32 %v1832, 4294901760
  %1834 = vmatmul.mubr.f32.gmra.mrb[0].mxu0 %v1833
  %v1835 = vpop.f32.mrb[0].mxu0
  %v1836 = vadd.f32 %v1565, %v1835
  %v1837 = vpop.f32.mrb[0].mxu0
  %1838 = vmatprep.mubr.f32.mxu0 0.0
  %v1839 = vand.u32 %v723, 4294901760
  %v1840 = vsub.f32 %v723, %v1839
  %v1841 = vand.u32 %v1840, 4294901760
  %1842 = vmatmul.mubr.f32.gmra.mrb[0].mxu0 %v1841
  %v1843 = vpop.f32.mrb[0].mxu0
  %v1844 = vadd.f32 %v1572, %v1843
  %v1845 = vpop.f32.mrb[0].mxu0
  %1846 = vmatprep.mubr.f32.mxu0 0.0
  %v1847 = vand.u32 %v726, 4294901760
  %v1848 = vsub.f32 %v726, %v1847
  %v1849 = vand.u32 %v1848, 4294901760
  %1850 = vmatmul.mubr.f32.gmra.mrb[0].mxu0 %v1849
  %v1851 = vpop.f32.mrb[0].mxu0
  %v1852 = vadd.f32 %v1579, %v1851
  %v1853 = vpop.f32.mrb[0].mxu0
  %1854 = vmatprep.mubr.f32.mxu0 0.0
  %v1855 = vand.u32 %v729, 4294901760
  %v1856 = vsub.f32 %v729, %v1855
  %v1857 = vand.u32 %v1856, 4294901760
  %1858 = vmatmul.mubr.f32.gmra.mrb[0].mxu0 %v1857
  %v1859 = vpop.f32.mrb[0].mxu0
  %v1860 = vadd.f32 %v1586, %v1859
  %v1861 = vpop.f32.mrb[0].mxu0
  %1862 = vmatprep.mubr.f32.mxu0 0.0
  %v1863 = vand.u32 %v732, 4294901760
  %v1864 = vsub.f32 %v732, %v1863
  %v1865 = vand.u32 %v1864, 4294901760
  %1866 = vmatmul.mubr.f32.gmra.mrb[0].mxu0 %v1865
  %v1867 = vpop.f32.mrb[0].mxu0
  %v1868 = vadd.f32 %v1593, %v1867
  %v1869 = vpop.f32.mrb[0].mxu0
  %1870 = vmatprep.mubr.f32.mxu0 0.0
  %v1871 = vand.u32 %v735, 4294901760
  %v1872 = vsub.f32 %v735, %v1871
  %v1873 = vand.u32 %v1872, 4294901760
  %1874 = vmatmul.mubr.f32.gmra.mrb[0].mxu0 %v1873
  %v1875 = vpop.f32.mrb[0].mxu0
  %v1876 = vadd.f32 %v1600, %v1875
  %v1877 = vpop.f32.mrb[0].mxu0
  %1878 = vmatprep.mubr.f32.mxu0 0.0
  %v1879 = vand.u32 %v738, 4294901760
  %v1880 = vsub.f32 %v738, %v1879
  %v1881 = vand.u32 %v1880, 4294901760
  %1882 = vmatmul.mubr.f32.gmra.mrb[0].mxu0 %v1881
  %v1883 = vpop.f32.mrb[0].mxu0
  %v1884 = vadd.f32 %v1607, %v1883
  %v1885 = vpop.f32.mrb[0].mxu0
  %1886 = vdwg.mxu0
  %1887 = vmatprep.subr.mxu0 0.0
  %v1888 = vand.u32 %v24, 4294901760
  %v1889 = vsub.f32 %v24, %v1888
  %v1890 = vand.u32 %v1889, 4294901760
  %1891 = vmatpush1.msra.mxu0 %v1890
  %1892 = vmatprep.subr.mxu0 0.0
  %v1893 = vand.u32 %v25, 4294901760
  %v1894 = vsub.f32 %v25, %v1893
  %v1895 = vand.u32 %v1894, 4294901760
  %1896 = vmatpush1.msra.mxu0 %v1895
  %1897 = vmatprep.subr.mxu0 0.0
  %v1898 = vand.u32 %v26, 4294901760
  %v1899 = vsub.f32 %v26, %v1898
  %v1900 = vand.u32 %v1899, 4294901760
  %1901 = vmatpush1.msra.mxu0 %v1900
  %1902 = vmatprep.subr.mxu0 0.0
  %v1903 = vand.u32 %v27, 4294901760
  %v1904 = vsub.f32 %v27, %v1903
  %v1905 = vand.u32 %v1904, 4294901760
  %1906 = vmatpush1.msra.mxu0 %v1905
  %1907 = vmatprep.subr.mxu0 0.0
  %v1908 = vand.u32 %v28, 4294901760
  %v1909 = vsub.f32 %v28, %v1908
  %v1910 = vand.u32 %v1909, 4294901760
  %1911 = vmatpush1.msra.mxu0 %v1910
  %1912 = vmatprep.subr.mxu0 0.0
  %v1913 = vand.u32 %v29, 4294901760
  %v1914 = vsub.f32 %v29, %v1913
  %v1915 = vand.u32 %v1914, 4294901760
  %1916 = vmatpush1.msra.mxu0 %v1915
  %1917 = vmatprep.subr.mxu0 0.0
  %v1918 = vand.u32 %v30, 4294901760
  %v1919 = vsub.f32 %v30, %v1918
  %v1920 = vand.u32 %v1919, 4294901760
  %1921 = vmatpush1.msra.mxu0 %v1920
  %1922 = vmatprep.subr.mxu0 0.0
  %v1923 = vand.u32 %v31, 4294901760
  %v1924 = vsub.f32 %v31, %v1923
  %v1925 = vand.u32 %v1924, 4294901760
  %1926 = vmatpush1.msra.mxu0 %v1925
  %1927 = vmatprep.subr.mxu0 0.0
  %v1928 = vand.u32 %v32, 4294901760
  %v1929 = vsub.f32 %v32, %v1928
  %v1930 = vand.u32 %v1929, 4294901760
  %1931 = vmatpush1.msra.mxu0 %v1930
  %1932 = vmatprep.subr.mxu0 0.0
  %v1933 = vand.u32 %v33, 4294901760
  %v1934 = vsub.f32 %v33, %v1933
  %v1935 = vand.u32 %v1934, 4294901760
  %1936 = vmatpush1.msra.mxu0 %v1935
  %1937 = vmatprep.subr.mxu0 0.0
  %v1938 = vand.u32 %v34, 4294901760
  %v1939 = vsub.f32 %v34, %v1938
  %v1940 = vand.u32 %v1939, 4294901760
  %1941 = vmatpush1.msra.mxu0 %v1940
  %1942 = vmatprep.subr.mxu0 0.0
  %v1943 = vand.u32 %v742, 4294901760
  %v1944 = vsub.f32 %v742, %v1943
  %v1945 = vand.u32 %v1944, 4294901760
  %1946 = vmatpush1.msra.mxu0 %v1945
  %1947 = vmatprep.subr.mxu0 0.0
  %1948 = vmatpush1.msra.mxu0 0.0
  %1949 = vmatprep.subr.mxu0 0.0
  %1950 = vmatpush1.msra.mxu0 0.0
  %1951 = vmatprep.subr.mxu0 0.0
  %1952 = vmatpush1.msra.mxu0 0.0
  %1953 = vmatprep.subr.mxu0 0.0
  %1954 = vmatpush1.msra.mxu0 0.0
  %1955 = vmatprep.subr.mxu0 0.0
  %1956 = vmatpush1.msra.mxu0 0.0
  %1957 = vmatprep.subr.mxu0 0.0
  %1958 = vmatpush1.msra.mxu0 0.0
  %1959 = vmatprep.subr.mxu0 0.0
  %1960 = vmatpush1.msra.mxu0 0.0
  %1961 = vmatprep.subr.mxu0 0.0
  %1962 = vmatpush1.msra.mxu0 0.0
  %1963 = vmatprep.subr.mxu0 0.0
  %1964 = vmatpush1.msra.mxu0 0.0
  %1965 = vmatprep.subr.mxu0 0.0
  %1966 = vmatpush1.msra.mxu0 0.0
  %1967 = vmatprep.subr.mxu0 0.0
  %1968 = vmatpush1.msra.mxu0 0.0
  %1969 = vmatprep.subr.mxu0 0.0
  %1970 = vmatpush1.msra.mxu0 0.0
  %1971 = vmatprep.subr.mxu0 0.0
  %1972 = vmatpush1.msra.mxu0 0.0
  %1973 = vmatprep.subr.mxu0 0.0
  %1974 = vmatpush1.msra.mxu0 0.0
  %1975 = vmatprep.subr.mxu0 0.0
  %1976 = vmatpush1.msra.mxu0 0.0
  %1977 = vmatprep.subr.mxu0 0.0
  %1978 = vmatpush1.msra.mxu0 0.0
  %1979 = vmatprep.subr.mxu0 0.0
  %1980 = vmatpush1.msra.mxu0 0.0
  %1981 = vmatprep.subr.mxu0 0.0
  %1982 = vmatpush1.msra.mxu0 0.0
  %1983 = vmatprep.subr.mxu0 0.0
  %1984 = vmatpush1.msra.mxu0 0.0
  %1985 = vmatprep.subr.mxu0 0.0
  %1986 = vmatpush1.msra.mxu0 0.0
  %1987 = vmatprep.mubr.f32.mxu0 0.0
  %v1988 = vand.u32 %v666, 4294901760
  %1989 = vmatmul.mubr.f32.gmra.mrb[0].mxu0 %v1988
  %v1990 = vpop.f32.mrb[0].mxu0
  %v1991 = vadd.f32 %v1692, %v1990
  %v1992 = vpop.f32.mrb[0].mxu0
  %1993 = vmatprep.mubr.f32.mxu0 0.0
  %v1994 = vand.u32 %v669, 4294901760
  %1995 = vmatmul.mubr.f32.gmra.mrb[0].mxu0 %v1994
  %v1996 = vpop.f32.mrb[0].mxu0
  %v1997 = vadd.f32 %v1700, %v1996
  %v1998 = vpop.f32.mrb[0].mxu0
  %1999 = vmatprep.mubr.f32.mxu0 0.0
  %v2000 = vand.u32 %v672, 4294901760
  %2001 = vmatmul.mubr.f32.gmra.mrb[0].mxu0 %v2000
  %v2002 = vpop.f32.mrb[0].mxu0
  %v2003 = vadd.f32 %v1708, %v2002
  %v2004 = vpop.f32.mrb[0].mxu0
  %2005 = vmatprep.mubr.f32.mxu0 0.0
  %v2006 = vand.u32 %v675, 4294901760
  %2007 = vmatmul.mubr.f32.gmra.mrb[0].mxu0 %v2006
  %v2008 = vpop.f32.mrb[0].mxu0
  %v2009 = vadd.f32 %v1716, %v2008
  %v2010 = vpop.f32.mrb[0].mxu0
  %2011 = vmatprep.mubr.f32.mxu0 0.0
  %v2012 = vand.u32 %v678, 4294901760
  %2013 = vmatmul.mubr.f32.gmra.mrb[0].mxu0 %v2012
  %v2014 = vpop.f32.mrb[0].mxu0
  %v2015 = vadd.f32 %v1724, %v2014
  %v2016 = vpop.f32.mrb[0].mxu0
  %2017 = vmatprep.mubr.f32.mxu0 0.0
  %v2018 = vand.u32 %v681, 4294901760
  %2019 = vmatmul.mubr.f32.gmra.mrb[0].mxu0 %v2018
  %v2020 = vpop.f32.mrb[0].mxu0
  %v2021 = vadd.f32 %v1732, %v2020
  %v2022 = vpop.f32.mrb[0].mxu0
  %2023 = vmatprep.mubr.f32.mxu0 0.0
  %v2024 = vand.u32 %v684, 4294901760
  %2025 = vmatmul.mubr.f32.gmra.mrb[0].mxu0 %v2024
  %v2026 = vpop.f32.mrb[0].mxu0
  %v2027 = vadd.f32 %v1740, %v2026
  %v2028 = vpop.f32.mrb[0].mxu0
  %2029 = vmatprep.mubr.f32.mxu0 0.0
  %v2030 = vand.u32 %v687, 4294901760
  %2031 = vmatmul.mubr.f32.gmra.mrb[0].mxu0 %v2030
  %v2032 = vpop.f32.mrb[0].mxu0
  %v2033 = vadd.f32 %v1748, %v2032
  %v2034 = vpop.f32.mrb[0].mxu0
  %2035 = vmatprep.mubr.f32.mxu0 0.0
  %v2036 = vand.u32 %v690, 4294901760
  %2037 = vmatmul.mubr.f32.gmra.mrb[0].mxu0 %v2036
  %v2038 = vpop.f32.mrb[0].mxu0
  %v2039 = vadd.f32 %v1756, %v2038
  %v2040 = vpop.f32.mrb[0].mxu0
  %2041 = vmatprep.mubr.f32.mxu0 0.0
  %v2042 = vand.u32 %v693, 4294901760
  %2043 = vmatmul.mubr.f32.gmra.mrb[0].mxu0 %v2042
  %v2044 = vpop.f32.mrb[0].mxu0
  %v2045 = vadd.f32 %v1764, %v2044
  %v2046 = vpop.f32.mrb[0].mxu0
  %2047 = vmatprep.mubr.f32.mxu0 0.0
  %v2048 = vand.u32 %v696, 4294901760
  %2049 = vmatmul.mubr.f32.gmra.mrb[0].mxu0 %v2048
  %v2050 = vpop.f32.mrb[0].mxu0
  %v2051 = vadd.f32 %v1772, %v2050
  %v2052 = vpop.f32.mrb[0].mxu0
  %2053 = vmatprep.mubr.f32.mxu0 0.0
  %v2054 = vand.u32 %v699, 4294901760
  %2055 = vmatmul.mubr.f32.gmra.mrb[0].mxu0 %v2054
  %v2056 = vpop.f32.mrb[0].mxu0
  %v2057 = vadd.f32 %v1780, %v2056
  %v2058 = vpop.f32.mrb[0].mxu0
  %2059 = vmatprep.mubr.f32.mxu0 0.0
  %v2060 = vand.u32 %v702, 4294901760
  %2061 = vmatmul.mubr.f32.gmra.mrb[0].mxu0 %v2060
  %v2062 = vpop.f32.mrb[0].mxu0
  %v2063 = vadd.f32 %v1788, %v2062
  %v2064 = vpop.f32.mrb[0].mxu0
  %2065 = vmatprep.mubr.f32.mxu0 0.0
  %v2066 = vand.u32 %v705, 4294901760
  %2067 = vmatmul.mubr.f32.gmra.mrb[0].mxu0 %v2066
  %v2068 = vpop.f32.mrb[0].mxu0
  %v2069 = vadd.f32 %v1796, %v2068
  %v2070 = vpop.f32.mrb[0].mxu0
  %2071 = vmatprep.mubr.f32.mxu0 0.0
  %v2072 = vand.u32 %v708, 4294901760
  %2073 = vmatmul.mubr.f32.gmra.mrb[0].mxu0 %v2072
  %v2074 = vpop.f32.mrb[0].mxu0
  %v2075 = vadd.f32 %v1804, %v2074
  %v2076 = vpop.f32.mrb[0].mxu0
  %2077 = vmatprep.mubr.f32.mxu0 0.0
  %v2078 = vand.u32 %v711, 4294901760
  %2079 = vmatmul.mubr.f32.gmra.mrb[0].mxu0 %v2078
  %v2080 = vpop.f32.mrb[0].mxu0
  %v2081 = vadd.f32 %v1812, %v2080
  %v2082 = vpop.f32.mrb[0].mxu0
  %2083 = vmatprep.mubr.f32.mxu0 0.0
  %v2084 = vand.u32 %v714, 4294901760
  %2085 = vmatmul.mubr.f32.gmra.mrb[0].mxu0 %v2084
  %v2086 = vpop.f32.mrb[0].mxu0
  %v2087 = vadd.f32 %v1820, %v2086
  %v2088 = vpop.f32.mrb[0].mxu0
  %2089 = vmatprep.mubr.f32.mxu0 0.0
  %v2090 = vand.u32 %v717, 4294901760
  %2091 = vmatmul.mubr.f32.gmra.mrb[0].mxu0 %v2090
  %v2092 = vpop.f32.mrb[0].mxu0
  %v2093 = vadd.f32 %v1828, %v2092
  %v2094 = vpop.f32.mrb[0].mxu0
  %2095 = vmatprep.mubr.f32.mxu0 0.0
  %v2096 = vand.u32 %v720, 4294901760
  %2097 = vmatmul.mubr.f32.gmra.mrb[0].mxu0 %v2096
  %v2098 = vpop.f32.mrb[0].mxu0
  %v2099 = vadd.f32 %v1836, %v2098
  %v2100 = vpop.f32.mrb[0].mxu0
  %2101 = vmatprep.mubr.f32.mxu0 0.0
  %v2102 = vand.u32 %v723, 4294901760
  %2103 = vmatmul.mubr.f32.gmra.mrb[0].mxu0 %v2102
  %v2104 = vpop.f32.mrb[0].mxu0
  %v2105 = vadd.f32 %v1844, %v2104
  %v2106 = vpop.f32.mrb[0].mxu0
  %2107 = vmatprep.mubr.f32.mxu0 0.0
  %v2108 = vand.u32 %v726, 4294901760
  %2109 = vmatmul.mubr.f32.gmra.mrb[0].mxu0 %v2108
  %v2110 = vpop.f32.mrb[0].mxu0
  %v2111 = vadd.f32 %v1852, %v2110
  %v2112 = vpop.f32.mrb[0].mxu0
  %2113 = vmatprep.mubr.f32.mxu0 0.0
  %v2114 = vand.u32 %v729, 4294901760
  %2115 = vmatmul.mubr.f32.gmra.mrb[0].mxu0 %v2114
  %v2116 = vpop.f32.mrb[0].mxu0
  %v2117 = vadd.f32 %v1860, %v2116
  %v2118 = vpop.f32.mrb[0].mxu0
  %2119 = vmatprep.mubr.f32.mxu0 0.0
  %v2120 = vand.u32 %v732, 4294901760
  %2121 = vmatmul.mubr.f32.gmra.mrb[0].mxu0 %v2120
  %v2122 = vpop.f32.mrb[0].mxu0
  %v2123 = vadd.f32 %v1868, %v2122
  %v2124 = vpop.f32.mrb[0].mxu0
  %2125 = vmatprep.mubr.f32.mxu0 0.0
  %v2126 = vand.u32 %v735, 4294901760
  %2127 = vmatmul.mubr.f32.gmra.mrb[0].mxu0 %v2126
  %v2128 = vpop.f32.mrb[0].mxu0
  %v2129 = vadd.f32 %v1876, %v2128
  %v2130 = vpop.f32.mrb[0].mxu0
  %2131 = vmatprep.mubr.f32.mxu0 0.0
  %v2132 = vand.u32 %v738, 4294901760
  %2133 = vmatmul.mubr.f32.gmra.mrb[0].mxu0 %v2132
  %v2134 = vpop.f32.mrb[0].mxu0
  %v2135 = vadd.f32 %v1884, %v2134
  %v2136 = vpop.f32.mrb[0].mxu0
  %2137 = vdwg.mxu0
  %2138 = vmatprep.subr.mxu0 0.0
  %v2139 = vand.u32 %v24, 4294901760
  %2140 = vmatpush1.msra.mxu0 %v2139
  %2141 = vmatprep.subr.mxu0 0.0
  %v2142 = vand.u32 %v25, 4294901760
  %2143 = vmatpush1.msra.mxu0 %v2142
  %2144 = vmatprep.subr.mxu0 0.0
  %v2145 = vand.u32 %v26, 4294901760
  %2146 = vmatpush1.msra.mxu0 %v2145
  %2147 = vmatprep.subr.mxu0 0.0
  %v2148 = vand.u32 %v27, 4294901760
  %2149 = vmatpush1.msra.mxu0 %v2148
  %2150 = vmatprep.subr.mxu0 0.0
  %v2151 = vand.u32 %v28, 4294901760
  %2152 = vmatpush1.msra.mxu0 %v2151
  %2153 = vmatprep.subr.mxu0 0.0
  %v2154 = vand.u32 %v29, 4294901760
  %2155 = vmatpush1.msra.mxu0 %v2154
  %2156 = vmatprep.subr.mxu0 0.0
  %v2157 = vand.u32 %v30, 4294901760
  %2158 = vmatpush1.msra.mxu0 %v2157
  %2159 = vmatprep.subr.mxu0 0.0
  %v2160 = vand.u32 %v31, 4294901760
  %2161 = vmatpush1.msra.mxu0 %v2160
  %2162 = vmatprep.subr.mxu0 0.0
  %v2163 = vand.u32 %v32, 4294901760
  %2164 = vmatpush1.msra.mxu0 %v2163
  %2165 = vmatprep.subr.mxu0 0.0
  %v2166 = vand.u32 %v33, 4294901760
  %2167 = vmatpush1.msra.mxu0 %v2166
  %2168 = vmatprep.subr.mxu0 0.0
  %v2169 = vand.u32 %v34, 4294901760
  %2170 = vmatpush1.msra.mxu0 %v2169
  %2171 = vmatprep.subr.mxu0 0.0
  %v2172 = vand.u32 %v742, 4294901760
  %2173 = vmatpush1.msra.mxu0 %v2172
  %2174 = vmatprep.subr.mxu0 0.0
  %2175 = vmatpush1.msra.mxu0 0.0
  %2176 = vmatprep.subr.mxu0 0.0
  %2177 = vmatpush1.msra.mxu0 0.0
  %2178 = vmatprep.subr.mxu0 0.0
  %2179 = vmatpush1.msra.mxu0 0.0
  %2180 = vmatprep.subr.mxu0 0.0
  %2181 = vmatpush1.msra.mxu0 0.0
  %2182 = vmatprep.subr.mxu0 0.0
  %2183 = vmatpush1.msra.mxu0 0.0
  %2184 = vmatprep.subr.mxu0 0.0
  %2185 = vmatpush1.msra.mxu0 0.0
  %2186 = vmatprep.subr.mxu0 0.0
  %2187 = vmatpush1.msra.mxu0 0.0
  %2188 = vmatprep.subr.mxu0 0.0
  %2189 = vmatpush1.msra.mxu0 0.0
  %2190 = vmatprep.subr.mxu0 0.0
  %2191 = vmatpush1.msra.mxu0 0.0
  %2192 = vmatprep.subr.mxu0 0.0
  %2193 = vmatpush1.msra.mxu0 0.0
  %2194 = vmatprep.subr.mxu0 0.0
  %2195 = vmatpush1.msra.mxu0 0.0
  %2196 = vmatprep.subr.mxu0 0.0
  %2197 = vmatpush1.msra.mxu0 0.0
  %2198 = vmatprep.subr.mxu0 0.0
  %2199 = vmatpush1.msra.mxu0 0.0
  %2200 = vmatprep.subr.mxu0 0.0
  %2201 = vmatpush1.msra.mxu0 0.0
  %2202 = vmatprep.subr.mxu0 0.0
  %2203 = vmatpush1.msra.mxu0 0.0
  %2204 = vmatprep.subr.mxu0 0.0
  %2205 = vmatpush1.msra.mxu0 0.0
  %2206 = vmatprep.subr.mxu0 0.0
  %2207 = vmatpush1.msra.mxu0 0.0
  %2208 = vmatprep.subr.mxu0 0.0
  %2209 = vmatpush1.msra.mxu0 0.0
  %2210 = vmatprep.subr.mxu0 0.0
  %2211 = vmatpush1.msra.mxu0 0.0
  %2212 = vmatprep.subr.mxu0 0.0
  %2213 = vmatpush1.msra.mxu0 0.0
  %2214 = vmatprep.mubr.f32.mxu0 0.0
  %v2215 = vand.u32 %v666, 4294901760
  %2216 = vmatmul.mubr.f32.gmra.mrb[0].mxu0 %v2215
  %v2217 = vpop.f32.mrb[0].mxu0
  %v2218 = vadd.f32 %v1991, %v2217
  %v2219 = vpop.f32.mrb[0].mxu0
  %2220 = vmatprep.mubr.f32.mxu0 0.0
  %v2221 = vand.u32 %v669, 4294901760
  %2222 = vmatmul.mubr.f32.gmra.mrb[0].mxu0 %v2221
  %v2223 = vpop.f32.mrb[0].mxu0
  %v2224 = vadd.f32 %v1997, %v2223
  %v2225 = vpop.f32.mrb[0].mxu0
  %2226 = vmatprep.mubr.f32.mxu0 0.0
  %v2227 = vand.u32 %v672, 4294901760
  %2228 = vmatmul.mubr.f32.gmra.mrb[0].mxu0 %v2227
  %v2229 = vpop.f32.mrb[0].mxu0
  %v2230 = vadd.f32 %v2003, %v2229
  %v2231 = vpop.f32.mrb[0].mxu0
  %2232 = vmatprep.mubr.f32.mxu0 0.0
  %v2233 = vand.u32 %v675, 4294901760
  %2234 = vmatmul.mubr.f32.gmra.mrb[0].mxu0 %v2233
  %v2235 = vpop.f32.mrb[0].mxu0
  %v2236 = vadd.f32 %v2009, %v2235
  %v2237 = vpop.f32.mrb[0].mxu0
  %2238 = vmatprep.mubr.f32.mxu0 0.0
  %v2239 = vand.u32 %v678, 4294901760
  %2240 = vmatmul.mubr.f32.gmra.mrb[0].mxu0 %v2239
  %v2241 = vpop.f32.mrb[0].mxu0
  %v2242 = vadd.f32 %v2015, %v2241
  %v2243 = vpop.f32.mrb[0].mxu0
  %2244 = vmatprep.mubr.f32.mxu0 0.0
  %v2245 = vand.u32 %v681, 4294901760
  %2246 = vmatmul.mubr.f32.gmra.mrb[0].mxu0 %v2245
  %v2247 = vpop.f32.mrb[0].mxu0
  %v2248 = vadd.f32 %v2021, %v2247
  %v2249 = vpop.f32.mrb[0].mxu0
  %2250 = vmatprep.mubr.f32.mxu0 0.0
  %v2251 = vand.u32 %v684, 4294901760
  %2252 = vmatmul.mubr.f32.gmra.mrb[0].mxu0 %v2251
  %v2253 = vpop.f32.mrb[0].mxu0
  %v2254 = vadd.f32 %v2027, %v2253
  %v2255 = vpop.f32.mrb[0].mxu0
  %2256 = vmatprep.mubr.f32.mxu0 0.0
  %v2257 = vand.u32 %v687, 4294901760
  %2258 = vmatmul.mubr.f32.gmra.mrb[0].mxu0 %v2257
  %v2259 = vpop.f32.mrb[0].mxu0
  %v2260 = vadd.f32 %v2033, %v2259
  %v2261 = vpop.f32.mrb[0].mxu0
  %2262 = vmatprep.mubr.f32.mxu0 0.0
  %v2263 = vand.u32 %v690, 4294901760
  %2264 = vmatmul.mubr.f32.gmra.mrb[0].mxu0 %v2263
  %v2265 = vpop.f32.mrb[0].mxu0
  %v2266 = vadd.f32 %v2039, %v2265
  %v2267 = vpop.f32.mrb[0].mxu0
  %2268 = vmatprep.mubr.f32.mxu0 0.0
  %v2269 = vand.u32 %v693, 4294901760
  %2270 = vmatmul.mubr.f32.gmra.mrb[0].mxu0 %v2269
  %v2271 = vpop.f32.mrb[0].mxu0
  %v2272 = vadd.f32 %v2045, %v2271
  %v2273 = vpop.f32.mrb[0].mxu0
  %2274 = vmatprep.mubr.f32.mxu0 0.0
  %v2275 = vand.u32 %v696, 4294901760
  %2276 = vmatmul.mubr.f32.gmra.mrb[0].mxu0 %v2275
  %v2277 = vpop.f32.mrb[0].mxu0
  %v2278 = vadd.f32 %v2051, %v2277
  %v2279 = vpop.f32.mrb[0].mxu0
  %2280 = vmatprep.mubr.f32.mxu0 0.0
  %v2281 = vand.u32 %v699, 4294901760
  %2282 = vmatmul.mubr.f32.gmra.mrb[0].mxu0 %v2281
  %v2283 = vpop.f32.mrb[0].mxu0
  %v2284 = vadd.f32 %v2057, %v2283
  %v2285 = vpop.f32.mrb[0].mxu0
  %2286 = vmatprep.mubr.f32.mxu0 0.0
  %v2287 = vand.u32 %v702, 4294901760
  %2288 = vmatmul.mubr.f32.gmra.mrb[0].mxu0 %v2287
  %v2289 = vpop.f32.mrb[0].mxu0
  %v2290 = vadd.f32 %v2063, %v2289
  %v2291 = vpop.f32.mrb[0].mxu0
  %2292 = vmatprep.mubr.f32.mxu0 0.0
  %v2293 = vand.u32 %v705, 4294901760
  %2294 = vmatmul.mubr.f32.gmra.mrb[0].mxu0 %v2293
  %v2295 = vpop.f32.mrb[0].mxu0
  %v2296 = vadd.f32 %v2069, %v2295
  %v2297 = vpop.f32.mrb[0].mxu0
  %2298 = vmatprep.mubr.f32.mxu0 0.0
  %v2299 = vand.u32 %v708, 4294901760
  %2300 = vmatmul.mubr.f32.gmra.mrb[0].mxu0 %v2299
  %v2301 = vpop.f32.mrb[0].mxu0
  %v2302 = vadd.f32 %v2075, %v2301
  %v2303 = vpop.f32.mrb[0].mxu0
  %2304 = vmatprep.mubr.f32.mxu0 0.0
  %v2305 = vand.u32 %v711, 4294901760
  %2306 = vmatmul.mubr.f32.gmra.mrb[0].mxu0 %v2305
  %v2307 = vpop.f32.mrb[0].mxu0
  %v2308 = vadd.f32 %v2081, %v2307
  %v2309 = vpop.f32.mrb[0].mxu0
  %2310 = vmatprep.mubr.f32.mxu0 0.0
  %v2311 = vand.u32 %v714, 4294901760
  %2312 = vmatmul.mubr.f32.gmra.mrb[0].mxu0 %v2311
  %v2313 = vpop.f32.mrb[0].mxu0
  %v2314 = vadd.f32 %v2087, %v2313
  %v2315 = vpop.f32.mrb[0].mxu0
  %2316 = vmatprep.mubr.f32.mxu0 0.0
  %v2317 = vand.u32 %v717, 4294901760
  %2318 = vmatmul.mubr.f32.gmra.mrb[0].mxu0 %v2317
  %v2319 = vpop.f32.mrb[0].mxu0
  %v2320 = vadd.f32 %v2093, %v2319
  %v2321 = vpop.f32.mrb[0].mxu0
  %2322 = vmatprep.mubr.f32.mxu0 0.0
  %v2323 = vand.u32 %v720, 4294901760
  %2324 = vmatmul.mubr.f32.gmra.mrb[0].mxu0 %v2323
  %v2325 = vpop.f32.mrb[0].mxu0
  %v2326 = vadd.f32 %v2099, %v2325
  %v2327 = vpop.f32.mrb[0].mxu0
  %2328 = vmatprep.mubr.f32.mxu0 0.0
  %v2329 = vand.u32 %v723, 4294901760
  %2330 = vmatmul.mubr.f32.gmra.mrb[0].mxu0 %v2329
  %v2331 = vpop.f32.mrb[0].mxu0
  %v2332 = vadd.f32 %v2105, %v2331
  %v2333 = vpop.f32.mrb[0].mxu0
  %2334 = vmatprep.mubr.f32.mxu0 0.0
  %v2335 = vand.u32 %v726, 4294901760
  %2336 = vmatmul.mubr.f32.gmra.mrb[0].mxu0 %v2335
  %v2337 = vpop.f32.mrb[0].mxu0
  %v2338 = vadd.f32 %v2111, %v2337
  %v2339 = vpop.f32.mrb[0].mxu0
  %2340 = vmatprep.mubr.f32.mxu0 0.0
  %v2341 = vand.u32 %v729, 4294901760
  %2342 = vmatmul.mubr.f32.gmra.mrb[0].mxu0 %v2341
  %v2343 = vpop.f32.mrb[0].mxu0
  %v2344 = vadd.f32 %v2117, %v2343
  %v2345 = vpop.f32.mrb[0].mxu0
  %2346 = vmatprep.mubr.f32.mxu0 0.0
  %v2347 = vand.u32 %v732, 4294901760
  %2348 = vmatmul.mubr.f32.gmra.mrb[0].mxu0 %v2347
  %v2349 = vpop.f32.mrb[0].mxu0
  %v2350 = vadd.f32 %v2123, %v2349
  %v2351 = vpop.f32.mrb[0].mxu0
  %2352 = vmatprep.mubr.f32.mxu0 0.0
  %v2353 = vand.u32 %v735, 4294901760
  %2354 = vmatmul.mubr.f32.gmra.mrb[0].mxu0 %v2353
  %v2355 = vpop.f32.mrb[0].mxu0
  %v2356 = vadd.f32 %v2129, %v2355
  %v2357 = vpop.f32.mrb[0].mxu0
  %2358 = vmatprep.mubr.f32.mxu0 0.0
  %v2359 = vand.u32 %v738, 4294901760
  %2360 = vmatmul.mubr.f32.gmra.mrb[0].mxu0 %v2359
  %v2361 = vpop.f32.mrb[0].mxu0
  %v2362 = vadd.f32 %v2135, %v2361
  %v2363 = vpop.f32.mrb[0].mxu0
  %2364 = vdwg.mxu0
  %vm2365 = vcmask 15360
  %2366 = vst.msk [vmem:[%s5] sm:$0xff] %vm2365, %v2218
  %2367 = vst.msk [vmem:[%s5 + $0x8] sm:$0xff] %vm2365, %v2224
  %2368 = vst.msk [vmem:[%s5 + $0x10] sm:$0xff] %vm2365, %v2230
  %2369 = vst.msk [vmem:[%s5 + $0x18] sm:$0xff] %vm2365, %v2236
  %2370 = vst.msk [vmem:[%s5 + $0x20] sm:$0xff] %vm2365, %v2242
  %2371 = vst.msk [vmem:[%s5 + $0x28] sm:$0xff] %vm2365, %v2248
  %2372 = vst.msk [vmem:[%s5 + $0x30] sm:$0xff] %vm2365, %v2254
  %2373 = vst.msk [vmem:[%s5 + $0x38] sm:$0xff] %vm2365, %v2260
  %2374 = vst.msk [vmem:[%s5 + $0x40] sm:$0xff] %vm2365, %v2266
  %2375 = vst.msk [vmem:[%s5 + $0x48] sm:$0xff] %vm2365, %v2272
  %2376 = vst.msk [vmem:[%s5 + $0x50] sm:$0xff] %vm2365, %v2278
  %2377 = vst.msk [vmem:[%s5 + $0x58] sm:$0xff] %vm2365, %v2284
  %2378 = vst.msk [vmem:[%s5 + $0x60] sm:$0xff] %vm2365, %v2290
  %2379 = vst.msk [vmem:[%s5 + $0x68] sm:$0xff] %vm2365, %v2296
  %2380 = vst.msk [vmem:[%s5 + $0x70] sm:$0xff] %vm2365, %v2302
  %2381 = vst.msk [vmem:[%s5 + $0x78] sm:$0xff] %vm2365, %v2308
  %2382 = vst.msk [vmem:[%s5 + $0x80] sm:$0xff] %vm2365, %v2314
  %2383 = vst.msk [vmem:[%s5 + $0x88] sm:$0xff] %vm2365, %v2320
  %2384 = vst.msk [vmem:[%s5 + $0x90] sm:$0xff] %vm2365, %v2326
  %2385 = vst.msk [vmem:[%s5 + $0x98] sm:$0xff] %vm2365, %v2332
  %2386 = vst.msk [vmem:[%s5 + $0xa0] sm:$0xff] %vm2365, %v2338
  %2387 = vst.msk [vmem:[%s5 + $0xa8] sm:$0xff] %vm2365, %v2344
  %2388 = vst.msk [vmem:[%s5 + $0xb0] sm:$0xff] %vm2365, %v2350
  %2389 = vst.msk [vmem:[%s5 + $0xb8] sm:$0xff] %vm2365, %v2356
  %2390 = vst.msk [vmem:[%s5 + $0xc0] sm:$0xff] %vm2365, %v2362
  // Predicated region
  $region22: #{tpu_custom_call.1} parent=0 // pred_check
    _
  $region23: #{tpu_custom_call.1} parent=0 // pred_check_branch
    %2392 = sbr.rel (0) target = $region25
  $region24: #{tpu_custom_call.1} parent=0 // pred_region
    _
  $region25: #{tpu_custom_call.1} parent=0 // pred_fallthru
    _
  // Predicated region
  $region26: #{tpu_custom_call.1} parent=0 // pred_check
    _
  $region27: #{tpu_custom_call.1} parent=0 // pred_check_branch
    %2394 = sbr.rel (0) target = $region29
  $region28: #{tpu_custom_call.1} parent=0 // pred_region
    _
  $region29: #{tpu_custom_call.1} parent=0 // pred_fallthru
    _

</llo_original>
